<compile_context>
chip_gen: v5e
topology: v5e:2x2
jax: 0.10.0
libtpu: 0.0.40
codegen_flags: <defaults>
</compile_context>

<pallas_src>
import functools
import math

import jax
import jax.numpy as jnp
from jax.experimental import pallas as pl
from jax.experimental.pallas import tpu as pltpu


def _layer_norm(v, g, b, eps=1e-5):
    v = v.astype(jnp.float32)
    mu = jnp.mean(v, axis=-1, keepdims=True)
    var = jnp.mean((v - mu) ** 2, axis=-1, keepdims=True)
    return (v - mu) * jax.lax.rsqrt(var + eps) * g + b


def _gelu_exact(x):
    # PyTorch nn.GELU() default (approximate='none'): 0.5*x*(1+erf(x/sqrt(2)))
    return 0.5 * x * (1.0 + jax.lax.erf(x * (1.0 / math.sqrt(2.0))))


def decoder_block_kernel(
    x_ref,
    ln1_g_ref, ln1_b_ref,
    wqkv_h_ref, bqkv_h_ref,
    wo_h_ref, bo_ref,
    ln2_g_ref, ln2_b_ref,
    w1_ref, b1_ref, w2_ref, b2_ref,
    out_ref, attn_ref,
    xln_sc, acc_sc,
    *, head_dim, compute_dtype, approx_recip,
):
    h = pl.program_id(1)
    last_h = pl.num_programs(1) - 1
    cd = compute_dtype
    Dh = head_dim

    # ---- per-batch init (first head): ln1 + zero the output-proj accumulator
    @pl.when(h == 0)
    def _init():
        x = x_ref[0]                               # (S, E)
        xln_sc[...] = _layer_norm(x, ln1_g_ref[...], ln1_b_ref[...]).astype(cd)
        acc_sc[...] = jnp.zeros_like(acc_sc)

    xln = xln_sc[...]                              # (S, E) compute_dtype
    S = xln.shape[0]

    # ---- this head's fused Q/K/V projection: one (E, 3*Dh) matmul ----
    qkv = jnp.dot(xln, wqkv_h_ref[0],
                  preferred_element_type=jnp.float32) + bqkv_h_ref[0]
    q = qkv[:, 0 * Dh:1 * Dh]
    k = qkv[:, 1 * Dh:2 * Dh]
    v = qkv[:, 2 * Dh:3 * Dh]

    # ---- masked attention for this head (f32 softmax) ----
    row = jax.lax.broadcasted_iota(jnp.int32, (S, S), 0)
    col = jax.lax.broadcasted_iota(jnp.int32, (S, S), 1)
    # q @ k^T without materializing a transpose: contract the last dims.
    s = jax.lax.dot_general(
        q.astype(cd), k.astype(cd),
        dimension_numbers=(((1,), (1,)), ((), ())),
        preferred_element_type=jnp.float32,
    ) * (1.0 / math.sqrt(Dh))
    s = jnp.where(col <= row, s, -1e30)
    m = jnp.max(s, axis=-1, keepdims=True)
    p = jnp.exp(s - m)
    w = p * pl.reciprocal(jnp.sum(p, axis=-1, keepdims=True),
                          approx=approx_recip)                 # (S, S)
    attn_ref[0, 0] = w

    oh = jnp.dot(w.astype(cd), v.astype(cd),
                 preferred_element_type=jnp.float32)           # (S, Dh)
    # accumulate this head's contribution to the output projection
    acc_sc[...] += jnp.dot(oh.astype(cd), wo_h_ref[...],
                           preferred_element_type=jnp.float32)

    # ---- last head: output-proj bias, residual 1, ln2 + FFN, residual 2 ----
    @pl.when(h == last_h)
    def _finalize():
        x = x_ref[0].astype(jnp.float32)
        scores = acc_sc[...] + bo_ref[...]
        x1 = x + scores                                        # dropout = id
        x1ln = _layer_norm(x1, ln2_g_ref[...], ln2_b_ref[...])
        hdn = jnp.dot(x1ln.astype(cd), w1_ref[...],
                      preferred_element_type=jnp.float32) + b1_ref[...]
        hdn = _gelu_exact(hdn)
        ffn = jnp.dot(hdn.astype(cd), w2_ref[...],
                      preferred_element_type=jnp.float32) + b2_ref[...]
        out_ref[0] = (x1 + ffn).astype(out_ref.dtype)          # dropout = id


def decoder_block(x, params, *, num_heads, head_dim,
                  compute_dtype=jnp.bfloat16, approx_recip=True):
    B, S, E = x.shape
    HD = num_heads * head_dim
    F = params["w1"].shape[1]
    cd = compute_dtype
    Dh = head_dim

    # ---- host-side weight prep: per-head fused QKV, bf16 casts ----
    def per_head_cols(wm):          # (E, HD) -> (H, E, Dh)
        return jnp.transpose(wm.reshape(E, num_heads, Dh), (1, 0, 2))

    def per_head_bias(bm):          # (1, HD) -> (H, 1, Dh)
        return jnp.transpose(bm.reshape(1, num_heads, Dh), (1, 0, 2))

    wqkv_h = jnp.concatenate(
        [per_head_cols(params["wq"]), per_head_cols(params["wk"]),
         per_head_cols(params["wv"])], axis=-1).astype(cd)     # (H, E, 3*Dh)
    bqkv_h = jnp.concatenate(
        [per_head_bias(params["bq"]), per_head_bias(params["bk"]),
         per_head_bias(params["bv"])], axis=-1)                # (H, 1, 3*Dh) f32

    wo = params["wo"].astype(cd)                               # (HD, E)
    w1 = params["w1"].astype(cd)                               # (E, F)
    w2 = params["w2"].astype(cd)                               # (F, E)

    # ---- VMEM budget sized from the actual block footprint (+ headroom) ----
    wsz = jnp.dtype(cd).itemsize
    est = (
        2 * (S * E * 4)                               # x block (dbl buffered)
        + 2 * (S * E * x.dtype.itemsize)              # out block
        + 2 * (S * S * 4)                             # attn block
        + 2 * (E * 3 * Dh + Dh * E) * wsz             # per-head weight blocks
        + 2 * (3 * Dh) * 4                            # per-head bias block
        + (E * F + F * E) * wsz                       # resident FFN weights
        + (S * E) * (wsz + 4)                         # scratches
        + (6 * E + F + 3 * HD) * 4                    # biases / LN params
    )
    vmem_limit = int(max(32 * 2 ** 20, min(100 * 2 ** 20, 2 * est + (8 << 20))))

    out_shapes = (
        jax.ShapeDtypeStruct((B, S, E), x.dtype),
        jax.ShapeDtypeStruct((B, num_heads, S, S), jnp.float32),
    )
    kernel = functools.partial(
        decoder_block_kernel,
        head_dim=Dh, compute_dtype=cd, approx_recip=approx_recip)

    def run(single_buffer_weights):
        # Grid-invariant blocks: single buffer (constant index_map -> double
        # buffering only doubles VMEM residency).
        resident = (dict(pipeline_mode=pl.Buffered(1))
                    if single_buffer_weights else {})

        def const_spec(shape):
            return pl.BlockSpec(shape, lambda b, h: (0,) * len(shape),
                                **resident)

        in_specs = [
            pl.BlockSpec((1, S, E), lambda b, h: (b, 0, 0)),           # x
            const_spec((1, E)), const_spec((1, E)),                    # ln1
            pl.BlockSpec((1, E, 3 * Dh), lambda b, h: (h, 0, 0)),      # Wqkv[h]
            pl.BlockSpec((1, 1, 3 * Dh), lambda b, h: (h, 0, 0)),      # bqkv[h]
            pl.BlockSpec((Dh, E), lambda b, h: (h, 0)),                # Wo[h]
            const_spec((1, E)),                                        # bo
            const_spec((1, E)), const_spec((1, E)),                    # ln2
            const_spec((E, F)), const_spec((1, F)),                    # W1, b1
            const_spec((F, E)), const_spec((1, E)),                    # W2, b2
        ]
        out_specs = (
            pl.BlockSpec((1, S, E), lambda b, h: (b, 0, 0)),
            pl.BlockSpec((1, 1, S, S), lambda b, h: (b, h, 0, 0)),
        )

        result = pl.pallas_call(
            kernel,
            out_shape=out_shapes,
            grid_spec=pltpu.PrefetchScalarGridSpec(
                num_scalar_prefetch=0,
                grid=(B, num_heads),
                in_specs=in_specs,
                out_specs=out_specs,
                scratch_shapes=[
                    pltpu.VMEM((S, E), cd),            # ln1(x)
                    pltpu.VMEM((S, E), jnp.float32),   # output-proj accumulator
                ],
            ),
            compiler_params=pltpu.CompilerParams(
                dimension_semantics=("parallel", "arbitrary"),
                vmem_limit_bytes=vmem_limit,
            ),
        )(
            x,
            params["ln1_g"], params["ln1_b"],
            wqkv_h, bqkv_h,
            wo, params["bo"],
            params["ln2_g"], params["ln2_b"],
            w1, params["b1"], w2, params["b2"],
        )
        jax.block_until_ready(result)
        return result

    try:
        return run(True)
    except Exception:
        # Older jax without BlockSpec(pipeline_mode=pl.Buffered(...)) support:
        # fall back to default double-buffered weight blocks.
        return run(False)


def init_params(key, embed_dim, hidden_dim, num_heads, dec_ffn_h_dim):
    HD = num_heads * hidden_dim
    keys = jax.random.split(key, 10)

    def lin(k, fan_in, shape):
        return jax.random.normal(k, shape, jnp.float32) / math.sqrt(fan_in)

    return {
        "ln1_g": jnp.ones((1, embed_dim), jnp.float32),
        "ln1_b": jnp.zeros((1, embed_dim), jnp.float32),
        "wq": lin(keys[0], embed_dim, (embed_dim, HD)),
        "bq": jnp.zeros((1, HD), jnp.float32),
        "wk": lin(keys[1], embed_dim, (embed_dim, HD)),
        "bk": jnp.zeros((1, HD), jnp.float32),
        "wv": lin(keys[2], embed_dim, (embed_dim, HD)),
        "bv": jnp.zeros((1, HD), jnp.float32),
        "wo": lin(keys[3], HD, (HD, embed_dim)),
        "bo": jnp.zeros((1, embed_dim), jnp.float32),
        "ln2_g": jnp.ones((1, embed_dim), jnp.float32),
        "ln2_b": jnp.zeros((1, embed_dim), jnp.float32),
        "w1": lin(keys[4], embed_dim, (embed_dim, dec_ffn_h_dim)),
        "b1": jnp.zeros((1, dec_ffn_h_dim), jnp.float32),
        "w2": lin(keys[5], dec_ffn_h_dim, (dec_ffn_h_dim, embed_dim)),
        "b2": jnp.zeros((1, embed_dim), jnp.float32),
    }


def _reference(x, params, num_heads, head_dim):
    """Pure-JAX reference matching the PyTorch module (eval mode)."""
    B, S, E = x.shape
    HD = num_heads * head_dim

    def ln(v, g, b):
        mu = v.mean(-1, keepdims=True)
        var = ((v - mu) ** 2).mean(-1, keepdims=True)
        return (v - mu) * jax.lax.rsqrt(var + 1e-5) * g + b

    xln = ln(x, params["ln1_g"], params["ln1_b"])
    q = xln @ params["wq"] + params["bq"]
    k = xln @ params["wk"] + params["bk"]
    v = xln @ params["wv"] + params["bv"]

    def split(t):
        return t.reshape(B, S, num_heads, head_dim).transpose(0, 2, 1, 3)

    qh, kh, vh = split(q), split(k), split(v)
    s = jnp.einsum("bhqd,bhkd->bhqk", qh, kh) / math.sqrt(head_dim)
    mask = jnp.tril(jnp.ones((S, S), bool))
    s = jnp.where(mask, s, -1e30)
    w = jax.nn.softmax(s, axis=-1)
    o = jnp.einsum("bhqk,bhkd->bhqd", w, vh)
    o = o.transpose(0, 2, 1, 3).reshape(B, S, HD)
    scores = o @ params["wo"] + params["bo"]
    x1 = x + scores
    x1ln = ln(x1, params["ln2_g"], params["ln2_b"])
    hdn = x1ln @ params["w1"] + params["b1"]
    hdn = 0.5 * hdn * (1.0 + jax.lax.erf(hdn / math.sqrt(2.0)))
    ffn = hdn @ params["w2"] + params["b2"]
    return x1 + ffn, w


if __name__ == "__main__":
    B, S = 2, 8
    embed_dim, hidden_dim, num_heads, dec_ffn_h_dim = 32, 16, 4, 64

    key = jax.random.PRNGKey(0)
    kx, kp = jax.random.split(key)
    x = jax.random.normal(kx, (B, S, embed_dim), jnp.float32)
    params = init_params(kp, embed_dim, hidden_dim, num_heads, dec_ffn_h_dim)

    # Exact-path (f32 operands, exact reciprocal) correctness check vs. reference.
    out_exact, attn_exact = decoder_block(
        x, params, num_heads=num_heads, head_dim=hidden_dim,
        compute_dtype=jnp.float32, approx_recip=False)
    out_ref, attn_ref = _reference(x, params, num_heads, hidden_dim)
    assert jnp.allclose(out_exact, out_ref, atol=5e-3, rtol=5e-3)
    assert jnp.allclose(attn_exact, attn_ref, atol=1e-4, rtol=1e-4)

    # Default fast path: bf16 matmul operands, approx softmax reciprocal.
    out, attn_weights = decoder_block(
        x, params, num_heads=num_heads, head_dim=hidden_dim)
    jax.block_until_ready((out, attn_weights))

    assert out.shape == (B, S, embed_dim)
    assert attn_weights.shape == (B, num_heads, S, S)
    assert bool(jnp.all(jnp.isfinite(out)))
    assert jnp.allclose(attn_weights.sum(-1), 1.0, atol=5e-2)
    print("KERNEL_OK")
</pallas_src>

<mosaic_0001>
module attributes {stable_mosaic.version = 11 : i64} {
  func.func @decoder_block_kernel(%arg0: i32, %arg1: i32, %arg2: memref<1x8x32xf32, #tpu.memory_space<vmem>>, %arg3: memref<1x32xf32, #tpu.memory_space<vmem>>, %arg4: memref<1x32xf32, #tpu.memory_space<vmem>>, %arg5: memref<1x32x48xf32, #tpu.memory_space<vmem>>, %arg6: memref<1x1x48xf32, #tpu.memory_space<vmem>>, %arg7: memref<16x32xf32, #tpu.memory_space<vmem>>, %arg8: memref<1x32xf32, #tpu.memory_space<vmem>>, %arg9: memref<1x32xf32, #tpu.memory_space<vmem>>, %arg10: memref<1x32xf32, #tpu.memory_space<vmem>>, %arg11: memref<32x64xf32, #tpu.memory_space<vmem>>, %arg12: memref<1x64xf32, #tpu.memory_space<vmem>>, %arg13: memref<64x32xf32, #tpu.memory_space<vmem>>, %arg14: memref<1x32xf32, #tpu.memory_space<vmem>>, %arg15: memref<1x8x32xf32, #tpu.memory_space<vmem>>, %arg16: memref<1x1x8x8xf32, #tpu.memory_space<vmem>>, %arg17: memref<8x32xf32, #tpu.memory_space<vmem>>, %arg18: memref<8x32xf32, #tpu.memory_space<vmem>>) attributes {dimension_semantics = [#tpu.dimension_semantics<parallel>, #tpu.dimension_semantics<arbitrary>], iteration_bounds = array<i64: 2, 4>, scalar_prefetch = 0 : i64, scratch_operands = 2 : i64, tpu.core_type = #tpu.core_type<tc>, window_params = [{transform_indices = @transform_0, window_bounds = array<i64: 1, 8, 32>}, {pipeline_mode = #tpu.pipeline_mode<synchronous>, transform_indices = @transform_1, window_bounds = array<i64: 1, 32>}, {pipeline_mode = #tpu.pipeline_mode<synchronous>, transform_indices = @transform_2, window_bounds = array<i64: 1, 32>}, {transform_indices = @transform_3, window_bounds = array<i64: 1, 32, 48>}, {transform_indices = @transform_4, window_bounds = array<i64: 1, 1, 48>}, {transform_indices = @transform_5, window_bounds = array<i64: 16, 32>}, {pipeline_mode = #tpu.pipeline_mode<synchronous>, transform_indices = @transform_6, window_bounds = array<i64: 1, 32>}, {pipeline_mode = #tpu.pipeline_mode<synchronous>, transform_indices = @transform_7, window_bounds = array<i64: 1, 32>}, {pipeline_mode = #tpu.pipeline_mode<synchronous>, transform_indices = @transform_8, window_bounds = array<i64: 1, 32>}, {pipeline_mode = #tpu.pipeline_mode<synchronous>, transform_indices = @transform_9, window_bounds = array<i64: 32, 64>}, {pipeline_mode = #tpu.pipeline_mode<synchronous>, transform_indices = @transform_10, window_bounds = array<i64: 1, 64>}, {pipeline_mode = #tpu.pipeline_mode<synchronous>, transform_indices = @transform_11, window_bounds = array<i64: 64, 32>}, {pipeline_mode = #tpu.pipeline_mode<synchronous>, transform_indices = @transform_12, window_bounds = array<i64: 1, 32>}, {transform_indices = @transform_13, window_bounds = array<i64: 1, 8, 32>}, {transform_indices = @transform_14, window_bounds = array<i64: 1, 1, 8, 8>}]} {
    %c0_i32 = arith.constant 0 : i32
    %0 = arith.cmpi eq, %arg1, %c0_i32 : i32
    %1 = arith.extui %0 : i1 to i32
    %c0_i32_0 = arith.constant 0 : i32
    %2 = arith.cmpi ne, %1, %c0_i32_0 : i32
    scf.if %2 {
      %c0_26 = arith.constant 0 : index
      %c0_27 = arith.constant 0 : index
      %c0_28 = arith.constant 0 : index
      %44 = vector.load %arg2[%c0_26, %c0_27, %c0_28] : memref<1x8x32xf32, #tpu.memory_space<vmem>>, vector<1x8x32xf32>
      %45 = vector.shape_cast %44 : vector<1x8x32xf32> to vector<8x32xf32>
      %c0_29 = arith.constant 0 : index
      %c0_30 = arith.constant 0 : index
      %46 = vector.load %arg3[%c0_29, %c0_30] : memref<1x32xf32, #tpu.memory_space<vmem>>, vector<1x32xf32>
      %c0_31 = arith.constant 0 : index
      %c0_32 = arith.constant 0 : index
      %47 = vector.load %arg4[%c0_31, %c0_32] : memref<1x32xf32, #tpu.memory_space<vmem>>, vector<1x32xf32>
      %cst_33 = arith.constant dense<0.000000e+00> : vector<8xf32>
      %48 = vector.multi_reduction <add>, %45, %cst_33 [1] : vector<8x32xf32> to vector<8xf32>
      %49 = vector.shape_cast %48 : vector<8xf32> to vector<8x1xf32>
      %cst_34 = arith.constant 3.200000e+01 : f32
      %50 = vector.broadcast %cst_34 : f32 to vector<8x1xf32>
      %51 = arith.divf %49, %50 : vector<8x1xf32>
      %52 = vector.broadcast %51 : vector<8x1xf32> to vector<8x32xf32>
      %53 = arith.subf %45, %52 : vector<8x32xf32>
      %54 = arith.mulf %53, %53 : vector<8x32xf32>
      %cst_35 = arith.constant dense<0.000000e+00> : vector<8xf32>
      %55 = vector.multi_reduction <add>, %54, %cst_35 [1] : vector<8x32xf32> to vector<8xf32>
      %56 = vector.shape_cast %55 : vector<8xf32> to vector<8x1xf32>
      %cst_36 = arith.constant 3.200000e+01 : f32
      %57 = vector.broadcast %cst_36 : f32 to vector<8x1xf32>
      %58 = arith.divf %56, %57 : vector<8x1xf32>
      %59 = vector.broadcast %51 : vector<8x1xf32> to vector<8x32xf32>
      %60 = arith.subf %45, %59 : vector<8x32xf32>
      %cst_37 = arith.constant 9.99999974E-6 : f32
      %61 = vector.broadcast %cst_37 : f32 to vector<8x1xf32>
      %62 = arith.addf %58, %61 : vector<8x1xf32>
      %63 = math.rsqrt %62 : vector<8x1xf32>
      %64 = vector.broadcast %63 : vector<8x1xf32> to vector<8x32xf32>
      %65 = arith.mulf %60, %64 : vector<8x32xf32>
      %66 = vector.broadcast %46 : vector<1x32xf32> to vector<8x32xf32>
      %67 = arith.mulf %65, %66 : vector<8x32xf32>
      %68 = vector.broadcast %47 : vector<1x32xf32> to vector<8x32xf32>
      %69 = arith.addf %67, %68 : vector<8x32xf32>
      %c0_38 = arith.constant 0 : index
      %c0_39 = arith.constant 0 : index
      %70 = vector.load %arg17[%c0_38, %c0_39] : memref<8x32xf32, #tpu.memory_space<vmem>>, vector<8x32xf32>
      tpu.vector_store %arg17[%c0_38, %c0_39], %69 {strides = array<i32>} : memref<8x32xf32, #tpu.memory_space<vmem>>, vector<8x32xf32>,
      %cst_40 = arith.constant 0.000000e+00 : f32
      %71 = vector.broadcast %cst_40 : f32 to vector<8x32xf32>
      %c0_41 = arith.constant 0 : index
      %c0_42 = arith.constant 0 : index
      %72 = vector.load %arg18[%c0_41, %c0_42] : memref<8x32xf32, #tpu.memory_space<vmem>>, vector<8x32xf32>
      tpu.vector_store %arg18[%c0_41, %c0_42], %71 {strides = array<i32>} : memref<8x32xf32, #tpu.memory_space<vmem>>, vector<8x32xf32>,
    } else {
    }
    %c0 = arith.constant 0 : index
    %c0_1 = arith.constant 0 : index
    %3 = vector.load %arg17[%c0, %c0_1] : memref<8x32xf32, #tpu.memory_space<vmem>>, vector<8x32xf32>
    %c0_2 = arith.constant 0 : index
    %c0_3 = arith.constant 0 : index
    %c0_4 = arith.constant 0 : index
    %4 = vector.load %arg5[%c0_2, %c0_3, %c0_4] : memref<1x32x48xf32, #tpu.memory_space<vmem>>, vector<1x32x48xf32>
    %5 = vector.shape_cast %4 : vector<1x32x48xf32> to vector<32x48xf32>
    %cst = arith.constant dense<0.000000e+00> : vector<8x48xf32>
    %6 = tpu.matmul %3, %5, %cst {dimension_numbers = #tpu.dot_dimension_numbers<[1], [0], [0], [1], [0, 0, 1, 1], [], []>} : vector<8x32xf32>, vector<32x48xf32>, vector<8x48xf32> -> vector<8x48xf32>
    %c0_5 = arith.constant 0 : index
    %c0_6 = arith.constant 0 : index
    %c0_7 = arith.constant 0 : index
    %7 = vector.load %arg6[%c0_5, %c0_6, %c0_7] : memref<1x1x48xf32, #tpu.memory_space<vmem>>, vector<1x1x48xf32>
    %8 = vector.shape_cast %7 : vector<1x1x48xf32> to vector<1x48xf32>
    %9 = vector.broadcast %8 : vector<1x48xf32> to vector<8x48xf32>
    %10 = arith.addf %6, %9 : vector<8x48xf32>
    %11 = vector.extract_strided_slice %10 {offsets = [0, 0], sizes = [8, 16], strides = [1, 1]} : vector<8x48xf32> to vector<8x16xf32>
    %12 = vector.extract_strided_slice %10 {offsets = [0, 16], sizes = [8, 16], strides = [1, 1]} : vector<8x48xf32> to vector<8x16xf32>
    %13 = vector.extract_strided_slice %10 {offsets = [0, 32], sizes = [8, 16], strides = [1, 1]} : vector<8x48xf32> to vector<8x16xf32>
    %14 = tpu.iota {dimensions = array<i32: 0>} : vector<8x8xi32>
    %15 = tpu.iota {dimensions = array<i32: 1>} : vector<8x8xi32>
    %cst_8 = arith.constant dense<0.000000e+00> : vector<8x8xf32>
    %16 = tpu.matmul %11, %12, %cst_8 {dimension_numbers = #tpu.dot_dimension_numbers<[1], [1], [0], [0], [0, 0, 1, 0], [], []>} : vector<8x16xf32>, vector<8x16xf32>, vector<8x8xf32> -> vector<8x8xf32>
    %cst_9 = arith.constant 2.500000e-01 : f32
    %17 = vector.broadcast %cst_9 : f32 to vector<8x8xf32>
    %18 = arith.mulf %16, %17 : vector<8x8xf32>
    %19 = arith.cmpi sle, %15, %14 : vector<8x8xi32>
    %cst_10 = arith.constant -1.000000e+30 : f32
    %20 = vector.broadcast %cst_10 : f32 to vector<8x8xf32>
    %21 = arith.select %19, %18, %20 : vector<8x8xi1>, vector<8x8xf32>
    %cst_11 = arith.constant dense<0xFF800000> : vector<8xf32>
    %22 = vector.multi_reduction <maximumf>, %21, %cst_11 [1] : vector<8x8xf32> to vector<8xf32>
    %23 = vector.shape_cast %22 : vector<8xf32> to vector<8x1xf32>
    %24 = vector.broadcast %23 : vector<8x1xf32> to vector<8x8xf32>
    %25 = arith.subf %21, %24 : vector<8x8xf32>
    %26 = math.exp %25 : vector<8x8xf32>
    %cst_12 = arith.constant dense<0.000000e+00> : vector<8xf32>
    %27 = vector.multi_reduction <add>, %26, %cst_12 [1] : vector<8x8xf32> to vector<8xf32>
    %28 = vector.shape_cast %27 : vector<8xf32> to vector<8x1xf32>
    %29 = tpu.reciprocal %28 : vector<8x1xf32> -> vector<8x1xf32>
    %30 = vector.broadcast %29 : vector<8x1xf32> to vector<8x8xf32>
    %31 = arith.mulf %26, %30 : vector<8x8xf32>
    %c0_13 = arith.constant 0 : index
    %c0_14 = arith.constant 0 : index
    %c0_15 = arith.constant 0 : index
    %c0_16 = arith.constant 0 : index
    %32 = vector.load %arg16[%c0_13, %c0_14, %c0_15, %c0_16] : memref<1x1x8x8xf32, #tpu.memory_space<vmem>>, vector<1x1x8x8xf32>
    %33 = vector.shape_cast %32 : vector<1x1x8x8xf32> to vector<8x8xf32>
    %34 = vector.shape_cast %31 : vector<8x8xf32> to vector<1x1x8x8xf32>
    tpu.vector_store %arg16[%c0_13, %c0_14, %c0_15, %c0_16], %34 {strides = array<i32>} : memref<1x1x8x8xf32, #tpu.memory_space<vmem>>, vector<1x1x8x8xf32>,
    %cst_17 = arith.constant dense<0.000000e+00> : vector<8x16xf32>
    %35 = tpu.matmul %31, %13, %cst_17 {dimension_numbers = #tpu.dot_dimension_numbers<[1], [0], [0], [1], [0, 0, 1, 1], [], []>} : vector<8x8xf32>, vector<8x16xf32>, vector<8x16xf32> -> vector<8x16xf32>
    %c0_18 = arith.constant 0 : index
    %c0_19 = arith.constant 0 : index
    %36 = vector.load %arg18[%c0_18, %c0_19] : memref<8x32xf32, #tpu.memory_space<vmem>>, vector<8x32xf32>
    %c0_20 = arith.constant 0 : index
    %c0_21 = arith.constant 0 : index
    %37 = vector.load %arg7[%c0_20, %c0_21] : memref<16x32xf32, #tpu.memory_space<vmem>>, vector<16x32xf32>
    %cst_22 = arith.constant dense<0.000000e+00> : vector<8x32xf32>
    %38 = tpu.matmul %35, %37, %cst_22 {dimension_numbers = #tpu.dot_dimension_numbers<[1], [0], [0], [1], [0, 0, 1, 1], [], []>} : vector<8x16xf32>, vector<16x32xf32>, vector<8x32xf32> -> vector<8x32xf32>
    %39 = arith.addf %36, %38 : vector<8x32xf32>
    %c0_23 = arith.constant 0 : index
    %c0_24 = arith.constant 0 : index
    %40 = vector.load %arg18[%c0_23, %c0_24] : memref<8x32xf32, #tpu.memory_space<vmem>>, vector<8x32xf32>
    tpu.vector_store %arg18[%c0_23, %c0_24], %39 {strides = array<i32>} : memref<8x32xf32, #tpu.memory_space<vmem>>, vector<8x32xf32>,
    %c3_i32 = arith.constant 3 : i32
    %41 = arith.cmpi eq, %arg1, %c3_i32 : i32
    %42 = arith.extui %41 : i1 to i32
    %c0_i32_25 = arith.constant 0 : i32
    %43 = arith.cmpi ne, %42, %c0_i32_25 : i32
    scf.if %43 {
      %c0_26 = arith.constant 0 : index
      %c0_27 = arith.constant 0 : index
      %c0_28 = arith.constant 0 : index
      %44 = vector.load %arg2[%c0_26, %c0_27, %c0_28] : memref<1x8x32xf32, #tpu.memory_space<vmem>>, vector<1x8x32xf32>
      %45 = vector.shape_cast %44 : vector<1x8x32xf32> to vector<8x32xf32>
      %c0_29 = arith.constant 0 : index
      %c0_30 = arith.constant 0 : index
      %46 = vector.load %arg18[%c0_29, %c0_30] : memref<8x32xf32, #tpu.memory_space<vmem>>, vector<8x32xf32>
      %c0_31 = arith.constant 0 : index
      %c0_32 = arith.constant 0 : index
      %47 = vector.load %arg8[%c0_31, %c0_32] : memref<1x32xf32, #tpu.memory_space<vmem>>, vector<1x32xf32>
      %48 = vector.broadcast %47 : vector<1x32xf32> to vector<8x32xf32>
      %49 = arith.addf %46, %48 : vector<8x32xf32>
      %50 = arith.addf %45, %49 : vector<8x32xf32>
      %c0_33 = arith.constant 0 : index
      %c0_34 = arith.constant 0 : index
      %51 = vector.load %arg9[%c0_33, %c0_34] : memref<1x32xf32, #tpu.memory_space<vmem>>, vector<1x32xf32>
      %c0_35 = arith.constant 0 : index
      %c0_36 = arith.constant 0 : index
      %52 = vector.load %arg10[%c0_35, %c0_36] : memref<1x32xf32, #tpu.memory_space<vmem>>, vector<1x32xf32>
      %cst_37 = arith.constant dense<0.000000e+00> : vector<8xf32>
      %53 = vector.multi_reduction <add>, %50, %cst_37 [1] : vector<8x32xf32> to vector<8xf32>
      %54 = vector.shape_cast %53 : vector<8xf32> to vector<8x1xf32>
      %cst_38 = arith.constant 3.200000e+01 : f32
      %55 = vector.broadcast %cst_38 : f32 to vector<8x1xf32>
      %56 = arith.divf %54, %55 : vector<8x1xf32>
      %57 = vector.broadcast %56 : vector<8x1xf32> to vector<8x32xf32>
      %58 = arith.subf %50, %57 : vector<8x32xf32>
      %59 = arith.mulf %58, %58 : vector<8x32xf32>
      %cst_39 = arith.constant dense<0.000000e+00> : vector<8xf32>
      %60 = vector.multi_reduction <add>, %59, %cst_39 [1] : vector<8x32xf32> to vector<8xf32>
      %61 = vector.shape_cast %60 : vector<8xf32> to vector<8x1xf32>
      %cst_40 = arith.constant 3.200000e+01 : f32
      %62 = vector.broadcast %cst_40 : f32 to vector<8x1xf32>
      %63 = arith.divf %61, %62 : vector<8x1xf32>
      %64 = vector.broadcast %56 : vector<8x1xf32> to vector<8x32xf32>
      %65 = arith.subf %50, %64 : vector<8x32xf32>
      %cst_41 = arith.constant 9.99999974E-6 : f32
      %66 = vector.broadcast %cst_41 : f32 to vector<8x1xf32>
      %67 = arith.addf %63, %66 : vector<8x1xf32>
      %68 = math.rsqrt %67 : vector<8x1xf32>
      %69 = vector.broadcast %68 : vector<8x1xf32> to vector<8x32xf32>
      %70 = arith.mulf %65, %69 : vector<8x32xf32>
      %71 = vector.broadcast %51 : vector<1x32xf32> to vector<8x32xf32>
      %72 = arith.mulf %70, %71 : vector<8x32xf32>
      %73 = vector.broadcast %52 : vector<1x32xf32> to vector<8x32xf32>
      %74 = arith.addf %72, %73 : vector<8x32xf32>
      %c0_42 = arith.constant 0 : index
      %c0_43 = arith.constant 0 : index
      %75 = vector.load %arg11[%c0_42, %c0_43] : memref<32x64xf32, #tpu.memory_space<vmem>>, vector<32x64xf32>
      %cst_44 = arith.constant dense<0.000000e+00> : vector<8x64xf32>
      %76 = tpu.matmul %74, %75, %cst_44 {dimension_numbers = #tpu.dot_dimension_numbers<[1], [0], [0], [1], [0, 0, 1, 1], [], []>} : vector<8x32xf32>, vector<32x64xf32>, vector<8x64xf32> -> vector<8x64xf32>
      %c0_45 = arith.constant 0 : index
      %c0_46 = arith.constant 0 : index
      %77 = vector.load %arg12[%c0_45, %c0_46] : memref<1x64xf32, #tpu.memory_space<vmem>>, vector<1x64xf32>
      %78 = vector.broadcast %77 : vector<1x64xf32> to vector<8x64xf32>
      %79 = arith.addf %76, %78 : vector<8x64xf32>
      %cst_47 = arith.constant 5.000000e-01 : f32
      %80 = vector.broadcast %cst_47 : f32 to vector<8x64xf32>
      %81 = arith.mulf %80, %79 : vector<8x64xf32>
      %cst_48 = arith.constant 0.707106769 : f32
      %82 = vector.broadcast %cst_48 : f32 to vector<8x64xf32>
      %83 = arith.mulf %79, %82 : vector<8x64xf32>
      %84 = math.erf %83 : vector<8x64xf32>
      %cst_49 = arith.constant 1.000000e+00 : f32
      %85 = vector.broadcast %cst_49 : f32 to vector<8x64xf32>
      %86 = arith.addf %85, %84 : vector<8x64xf32>
      %87 = arith.mulf %81, %86 : vector<8x64xf32>
      %c0_50 = arith.constant 0 : index
      %c0_51 = arith.constant 0 : index
      %88 = vector.load %arg13[%c0_50, %c0_51] : memref<64x32xf32, #tpu.memory_space<vmem>>, vector<64x32xf32>
      %cst_52 = arith.constant dense<0.000000e+00> : vector<8x32xf32>
      %89 = tpu.matmul %87, %88, %cst_52 {dimension_numbers = #tpu.dot_dimension_numbers<[1], [0], [0], [1], [0, 0, 1, 1], [], []>} : vector<8x64xf32>, vector<64x32xf32>, vector<8x32xf32> -> vector<8x32xf32>
      %c0_53 = arith.constant 0 : index
      %c0_54 = arith.constant 0 : index
      %90 = vector.load %arg14[%c0_53, %c0_54] : memref<1x32xf32, #tpu.memory_space<vmem>>, vector<1x32xf32>
      %91 = vector.broadcast %90 : vector<1x32xf32> to vector<8x32xf32>
      %92 = arith.addf %89, %91 : vector<8x32xf32>
      %93 = arith.addf %50, %92 : vector<8x32xf32>
      %c0_55 = arith.constant 0 : index
      %c0_56 = arith.constant 0 : index
      %c0_57 = arith.constant 0 : index
      %94 = vector.load %arg15[%c0_55, %c0_56, %c0_57] : memref<1x8x32xf32, #tpu.memory_space<vmem>>, vector<1x8x32xf32>
      %95 = vector.shape_cast %94 : vector<1x8x32xf32> to vector<8x32xf32>
      %96 = vector.shape_cast %93 : vector<8x32xf32> to vector<1x8x32xf32>
      tpu.vector_store %arg15[%c0_55, %c0_56, %c0_57], %96 {strides = array<i32>} : memref<1x8x32xf32, #tpu.memory_space<vmem>>, vector<1x8x32xf32>,
    } else {
    }
    return
  }
  func.func @transform_0(%arg0: i32, %arg1: i32) -> (i32, i32, i32) {
    %c0_i32 = arith.constant 0 : i32
    %c0_i32_0 = arith.constant 0 : i32
    %c0_i32_1 = arith.constant 0 : i32
    return %arg0, %c0_i32, %c0_i32_0 : i32, i32, i32
  }
  func.func @transform_1(%arg0: i32, %arg1: i32) -> (i32, i32) {
    %c0_i32 = arith.constant 0 : i32
    %c0_i32_0 = arith.constant 0 : i32
    %c0_i32_1 = arith.constant 0 : i32
    return %c0_i32, %c0_i32_0 : i32, i32
  }
  func.func @transform_2(%arg0: i32, %arg1: i32) -> (i32, i32) {
    %c0_i32 = arith.constant 0 : i32
    %c0_i32_0 = arith.constant 0 : i32
    %c0_i32_1 = arith.constant 0 : i32
    return %c0_i32, %c0_i32_0 : i32, i32
  }
  func.func @transform_3(%arg0: i32, %arg1: i32) -> (i32, i32, i32) {
    %c0_i32 = arith.constant 0 : i32
    %c0_i32_0 = arith.constant 0 : i32
    %c0_i32_1 = arith.constant 0 : i32
    return %arg1, %c0_i32, %c0_i32_0 : i32, i32, i32
  }
  func.func @transform_4(%arg0: i32, %arg1: i32) -> (i32, i32, i32) {
    %c0_i32 = arith.constant 0 : i32
    %c0_i32_0 = arith.constant 0 : i32
    %c0_i32_1 = arith.constant 0 : i32
    return %arg1, %c0_i32, %c0_i32_0 : i32, i32, i32
  }
  func.func @transform_5(%arg0: i32, %arg1: i32) -> (i32, i32) {
    %c0_i32 = arith.constant 0 : i32
    %c0_i32_0 = arith.constant 0 : i32
    return %arg1, %c0_i32 : i32, i32
  }
  func.func @transform_6(%arg0: i32, %arg1: i32) -> (i32, i32) {
    %c0_i32 = arith.constant 0 : i32
    %c0_i32_0 = arith.constant 0 : i32
    %c0_i32_1 = arith.constant 0 : i32
    return %c0_i32, %c0_i32_0 : i32, i32
  }
  func.func @transform_7(%arg0: i32, %arg1: i32) -> (i32, i32) {
    %c0_i32 = arith.constant 0 : i32
    %c0_i32_0 = arith.constant 0 : i32
    %c0_i32_1 = arith.constant 0 : i32
    return %c0_i32, %c0_i32_0 : i32, i32
  }
  func.func @transform_8(%arg0: i32, %arg1: i32) -> (i32, i32) {
    %c0_i32 = arith.constant 0 : i32
    %c0_i32_0 = arith.constant 0 : i32
    %c0_i32_1 = arith.constant 0 : i32
    return %c0_i32, %c0_i32_0 : i32, i32
  }
  func.func @transform_9(%arg0: i32, %arg1: i32) -> (i32, i32) {
    %c0_i32 = arith.constant 0 : i32
    %c0_i32_0 = arith.constant 0 : i32
    %c0_i32_1 = arith.constant 0 : i32
    return %c0_i32, %c0_i32_0 : i32, i32
  }
  func.func @transform_10(%arg0: i32, %arg1: i32) -> (i32, i32) {
    %c0_i32 = arith.constant 0 : i32
    %c0_i32_0 = arith.constant 0 : i32
    %c0_i32_1 = arith.constant 0 : i32
    return %c0_i32, %c0_i32_0 : i32, i32
  }
  func.func @transform_11(%arg0: i32, %arg1: i32) -> (i32, i32) {
    %c0_i32 = arith.constant 0 : i32
    %c0_i32_0 = arith.constant 0 : i32
    %c0_i32_1 = arith.constant 0 : i32
    return %c0_i32, %c0_i32_0 : i32, i32
  }
  func.func @transform_12(%arg0: i32, %arg1: i32) -> (i32, i32) {
    %c0_i32 = arith.constant 0 : i32
    %c0_i32_0 = arith.constant 0 : i32
    %c0_i32_1 = arith.constant 0 : i32
    return %c0_i32, %c0_i32_0 : i32, i32
  }
  func.func @transform_13(%arg0: i32, %arg1: i32) -> (i32, i32, i32) {
    %c0_i32 = arith.constant 0 : i32
    %c0_i32_0 = arith.constant 0 : i32
    %c0_i32_1 = arith.constant 0 : i32
    return %arg0, %c0_i32, %c0_i32_0 : i32, i32, i32
  }
  func.func @transform_14(%arg0: i32, %arg1: i32) -> (i32, i32, i32, i32) {
    %c0_i32 = arith.constant 0 : i32
    %c0_i32_0 = arith.constant 0 : i32
    %c0_i32_1 = arith.constant 0 : i32
    return %arg0, %arg1, %c0_i32, %c0_i32_0 : i32, i32, i32, i32
  }
}

module attributes {stable_mosaic.version = 11 : i64} {
  func.func @decoder_block_kernel(%arg0: i32, %arg1: i32, %arg2: memref<1x8x32xf32, #tpu.memory_space<vmem>>, %arg3: memref<1x32xf32, #tpu.memory_space<vmem>>, %arg4: memref<1x32xf32, #tpu.memory_space<vmem>>, %arg5: memref<1x32x48xf32, #tpu.memory_space<vmem>>, %arg6: memref<1x1x48xf32, #tpu.memory_space<vmem>>, %arg7: memref<16x32xf32, #tpu.memory_space<vmem>>, %arg8: memref<1x32xf32, #tpu.memory_space<vmem>>, %arg9: memref<1x32xf32, #tpu.memory_space<vmem>>, %arg10: memref<1x32xf32, #tpu.memory_space<vmem>>, %arg11: memref<32x64xf32, #tpu.memory_space<vmem>>, %arg12: memref<1x64xf32, #tpu.memory_space<vmem>>, %arg13: memref<64x32xf32, #tpu.memory_space<vmem>>, %arg14: memref<1x32xf32, #tpu.memory_space<vmem>>, %arg15: memref<1x8x32xf32, #tpu.memory_space<vmem>>, %arg16: memref<1x1x8x8xf32, #tpu.memory_space<vmem>>, %arg17: memref<8x32xf32, #tpu.memory_space<vmem>>, %arg18: memref<8x32xf32, #tpu.memory_space<vmem>>) attributes {dimension_semantics = [#tpu.dimension_semantics<parallel>, #tpu.dimension_semantics<arbitrary>], iteration_bounds = array<i64: 2, 4>, scalar_prefetch = 0 : i64, scratch_operands = 2 : i64, tpu.core_type = #tpu.core_type<tc>, window_params = [{transform_indices = @transform_0, window_bounds = array<i64: 1, 8, 32>}, {pipeline_mode = #tpu.pipeline_mode<synchronous>, transform_indices = @transform_1, window_bounds = array<i64: 1, 32>}, {pipeline_mode = #tpu.pipeline_mode<synchronous>, transform_indices = @transform_2, window_bounds = array<i64: 1, 32>}, {transform_indices = @transform_3, window_bounds = array<i64: 1, 32, 48>}, {transform_indices = @transform_4, window_bounds = array<i64: 1, 1, 48>}, {transform_indices = @transform_5, window_bounds = array<i64: 16, 32>}, {pipeline_mode = #tpu.pipeline_mode<synchronous>, transform_indices = @transform_6, window_bounds = array<i64: 1, 32>}, {pipeline_mode = #tpu.pipeline_mode<synchronous>, transform_indices = @transform_7, window_bounds = array<i64: 1, 32>}, {pipeline_mode = #tpu.pipeline_mode<synchronous>, transform_indices = @transform_8, window_bounds = array<i64: 1, 32>}, {pipeline_mode = #tpu.pipeline_mode<synchronous>, transform_indices = @transform_9, window_bounds = array<i64: 32, 64>}, {pipeline_mode = #tpu.pipeline_mode<synchronous>, transform_indices = @transform_10, window_bounds = array<i64: 1, 64>}, {pipeline_mode = #tpu.pipeline_mode<synchronous>, transform_indices = @transform_11, window_bounds = array<i64: 64, 32>}, {pipeline_mode = #tpu.pipeline_mode<synchronous>, transform_indices = @transform_12, window_bounds = array<i64: 1, 32>}, {transform_indices = @transform_13, window_bounds = array<i64: 1, 8, 32>}, {transform_indices = @transform_14, window_bounds = array<i64: 1, 1, 8, 8>}]} {
    %c0_i32 = arith.constant 0 : i32
    %0 = arith.cmpi eq, %arg1, %c0_i32 : i32
    %1 = arith.extui %0 : i1 to i32
    %c0_i32_0 = arith.constant 0 : i32
    %2 = arith.cmpi ne, %1, %c0_i32_0 : i32
    scf.if %2 {
      %c0_26 = arith.constant 0 : index
      %c0_27 = arith.constant 0 : index
      %c0_28 = arith.constant 0 : index
      %44 = vector.load %arg2[%c0_26, %c0_27, %c0_28] : memref<1x8x32xf32, #tpu.memory_space<vmem>>, vector<1x8x32xf32>
      %45 = vector.shape_cast %44 : vector<1x8x32xf32> to vector<8x32xf32>
      %c0_29 = arith.constant 0 : index
      %c0_30 = arith.constant 0 : index
      %46 = vector.load %arg3[%c0_29, %c0_30] : memref<1x32xf32, #tpu.memory_space<vmem>>, vector<1x32xf32>
      %c0_31 = arith.constant 0 : index
      %c0_32 = arith.constant 0 : index
      %47 = vector.load %arg4[%c0_31, %c0_32] : memref<1x32xf32, #tpu.memory_space<vmem>>, vector<1x32xf32>
      %cst_33 = arith.constant dense<0.000000e+00> : vector<8xf32>
      %48 = vector.multi_reduction <add>, %45, %cst_33 [1] : vector<8x32xf32> to vector<8xf32>
      %49 = vector.shape_cast %48 : vector<8xf32> to vector<8x1xf32>
      %cst_34 = arith.constant 3.200000e+01 : f32
      %50 = vector.broadcast %cst_34 : f32 to vector<8x1xf32>
      %51 = arith.divf %49, %50 : vector<8x1xf32>
      %52 = vector.broadcast %51 : vector<8x1xf32> to vector<8x32xf32>
      %53 = arith.subf %45, %52 : vector<8x32xf32>
      %54 = arith.mulf %53, %53 : vector<8x32xf32>
      %cst_35 = arith.constant dense<0.000000e+00> : vector<8xf32>
      %55 = vector.multi_reduction <add>, %54, %cst_35 [1] : vector<8x32xf32> to vector<8xf32>
      %56 = vector.shape_cast %55 : vector<8xf32> to vector<8x1xf32>
      %cst_36 = arith.constant 3.200000e+01 : f32
      %57 = vector.broadcast %cst_36 : f32 to vector<8x1xf32>
      %58 = arith.divf %56, %57 : vector<8x1xf32>
      %59 = vector.broadcast %51 : vector<8x1xf32> to vector<8x32xf32>
      %60 = arith.subf %45, %59 : vector<8x32xf32>
      %cst_37 = arith.constant 9.99999974E-6 : f32
      %61 = vector.broadcast %cst_37 : f32 to vector<8x1xf32>
      %62 = arith.addf %58, %61 : vector<8x1xf32>
      %63 = math.rsqrt %62 : vector<8x1xf32>
      %64 = vector.broadcast %63 : vector<8x1xf32> to vector<8x32xf32>
      %65 = arith.mulf %60, %64 : vector<8x32xf32>
      %66 = vector.broadcast %46 : vector<1x32xf32> to vector<8x32xf32>
      %67 = arith.mulf %65, %66 : vector<8x32xf32>
      %68 = vector.broadcast %47 : vector<1x32xf32> to vector<8x32xf32>
      %69 = arith.addf %67, %68 : vector<8x32xf32>
      %c0_38 = arith.constant 0 : index
      %c0_39 = arith.constant 0 : index
      %70 = vector.load %arg17[%c0_38, %c0_39] : memref<8x32xf32, #tpu.memory_space<vmem>>, vector<8x32xf32>
      tpu.vector_store %arg17[%c0_38, %c0_39], %69 {strides = array<i32>} : memref<8x32xf32, #tpu.memory_space<vmem>>, vector<8x32xf32>,
      %cst_40 = arith.constant 0.000000e+00 : f32
      %71 = vector.broadcast %cst_40 : f32 to vector<8x32xf32>
      %c0_41 = arith.constant 0 : index
      %c0_42 = arith.constant 0 : index
      %72 = vector.load %arg18[%c0_41, %c0_42] : memref<8x32xf32, #tpu.memory_space<vmem>>, vector<8x32xf32>
      tpu.vector_store %arg18[%c0_41, %c0_42], %71 {strides = array<i32>} : memref<8x32xf32, #tpu.memory_space<vmem>>, vector<8x32xf32>,
    } else {
    }
    %c0 = arith.constant 0 : index
    %c0_1 = arith.constant 0 : index
    %3 = vector.load %arg17[%c0, %c0_1] : memref<8x32xf32, #tpu.memory_space<vmem>>, vector<8x32xf32>
    %c0_2 = arith.constant 0 : index
    %c0_3 = arith.constant 0 : index
    %c0_4 = arith.constant 0 : index
    %4 = vector.load %arg5[%c0_2, %c0_3, %c0_4] : memref<1x32x48xf32, #tpu.memory_space<vmem>>, vector<1x32x48xf32>
    %5 = vector.shape_cast %4 : vector<1x32x48xf32> to vector<32x48xf32>
    %cst = arith.constant dense<0.000000e+00> : vector<8x48xf32>
    %6 = tpu.matmul %3, %5, %cst {dimension_numbers = #tpu.dot_dimension_numbers<[1], [0], [0], [1], [0, 0, 1, 1], [], []>} : vector<8x32xf32>, vector<32x48xf32>, vector<8x48xf32> -> vector<8x48xf32>
    %c0_5 = arith.constant 0 : index
    %c0_6 = arith.constant 0 : index
    %c0_7 = arith.constant 0 : index
    %7 = vector.load %arg6[%c0_5, %c0_6, %c0_7] : memref<1x1x48xf32, #tpu.memory_space<vmem>>, vector<1x1x48xf32>
    %8 = vector.shape_cast %7 : vector<1x1x48xf32> to vector<1x48xf32>
    %9 = vector.broadcast %8 : vector<1x48xf32> to vector<8x48xf32>
    %10 = arith.addf %6, %9 : vector<8x48xf32>
    %11 = vector.extract_strided_slice %10 {offsets = [0, 0], sizes = [8, 16], strides = [1, 1]} : vector<8x48xf32> to vector<8x16xf32>
    %12 = vector.extract_strided_slice %10 {offsets = [0, 16], sizes = [8, 16], strides = [1, 1]} : vector<8x48xf32> to vector<8x16xf32>
    %13 = vector.extract_strided_slice %10 {offsets = [0, 32], sizes = [8, 16], strides = [1, 1]} : vector<8x48xf32> to vector<8x16xf32>
    %14 = tpu.iota {dimensions = array<i32: 0>} : vector<8x8xi32>
    %15 = tpu.iota {dimensions = array<i32: 1>} : vector<8x8xi32>
    %cst_8 = arith.constant dense<0.000000e+00> : vector<8x8xf32>
    %16 = tpu.matmul %11, %12, %cst_8 {dimension_numbers = #tpu.dot_dimension_numbers<[1], [1], [0], [0], [0, 0, 1, 0], [], []>} : vector<8x16xf32>, vector<8x16xf32>, vector<8x8xf32> -> vector<8x8xf32>
    %cst_9 = arith.constant 2.500000e-01 : f32
    %17 = vector.broadcast %cst_9 : f32 to vector<8x8xf32>
    %18 = arith.mulf %16, %17 : vector<8x8xf32>
    %19 = arith.cmpi sle, %15, %14 : vector<8x8xi32>
    %cst_10 = arith.constant -1.000000e+30 : f32
    %20 = vector.broadcast %cst_10 : f32 to vector<8x8xf32>
    %21 = arith.select %19, %18, %20 : vector<8x8xi1>, vector<8x8xf32>
    %cst_11 = arith.constant dense<0xFF800000> : vector<8xf32>
    %22 = vector.multi_reduction <maximumf>, %21, %cst_11 [1] : vector<8x8xf32> to vector<8xf32>
    %23 = vector.shape_cast %22 : vector<8xf32> to vector<8x1xf32>
    %24 = vector.broadcast %23 : vector<8x1xf32> to vector<8x8xf32>
    %25 = arith.subf %21, %24 : vector<8x8xf32>
    %26 = math.exp %25 : vector<8x8xf32>
    %cst_12 = arith.constant dense<0.000000e+00> : vector<8xf32>
    %27 = vector.multi_reduction <add>, %26, %cst_12 [1] : vector<8x8xf32> to vector<8xf32>
    %28 = vector.shape_cast %27 : vector<8xf32> to vector<8x1xf32>
    %29 = tpu.reciprocal %28 : vector<8x1xf32> -> vector<8x1xf32>
    %30 = vector.broadcast %29 : vector<8x1xf32> to vector<8x8xf32>
    %31 = arith.mulf %26, %30 : vector<8x8xf32>
    %c0_13 = arith.constant 0 : index
    %c0_14 = arith.constant 0 : index
    %c0_15 = arith.constant 0 : index
    %c0_16 = arith.constant 0 : index
    %32 = vector.load %arg16[%c0_13, %c0_14, %c0_15, %c0_16] : memref<1x1x8x8xf32, #tpu.memory_space<vmem>>, vector<1x1x8x8xf32>
    %33 = vector.shape_cast %32 : vector<1x1x8x8xf32> to vector<8x8xf32>
    %34 = vector.shape_cast %31 : vector<8x8xf32> to vector<1x1x8x8xf32>
    tpu.vector_store %arg16[%c0_13, %c0_14, %c0_15, %c0_16], %34 {strides = array<i32>} : memref<1x1x8x8xf32, #tpu.memory_space<vmem>>, vector<1x1x8x8xf32>,
    %cst_17 = arith.constant dense<0.000000e+00> : vector<8x16xf32>
    %35 = tpu.matmul %31, %13, %cst_17 {dimension_numbers = #tpu.dot_dimension_numbers<[1], [0], [0], [1], [0, 0, 1, 1], [], []>} : vector<8x8xf32>, vector<8x16xf32>, vector<8x16xf32> -> vector<8x16xf32>
    %c0_18 = arith.constant 0 : index
    %c0_19 = arith.constant 0 : index
    %36 = vector.load %arg18[%c0_18, %c0_19] : memref<8x32xf32, #tpu.memory_space<vmem>>, vector<8x32xf32>
    %c0_20 = arith.constant 0 : index
    %c0_21 = arith.constant 0 : index
    %37 = vector.load %arg7[%c0_20, %c0_21] : memref<16x32xf32, #tpu.memory_space<vmem>>, vector<16x32xf32>
    %cst_22 = arith.constant dense<0.000000e+00> : vector<8x32xf32>
    %38 = tpu.matmul %35, %37, %cst_22 {dimension_numbers = #tpu.dot_dimension_numbers<[1], [0], [0], [1], [0, 0, 1, 1], [], []>} : vector<8x16xf32>, vector<16x32xf32>, vector<8x32xf32> -> vector<8x32xf32>
    %39 = arith.addf %36, %38 : vector<8x32xf32>
    %c0_23 = arith.constant 0 : index
    %c0_24 = arith.constant 0 : index
    %40 = vector.load %arg18[%c0_23, %c0_24] : memref<8x32xf32, #tpu.memory_space<vmem>>, vector<8x32xf32>
    tpu.vector_store %arg18[%c0_23, %c0_24], %39 {strides = array<i32>} : memref<8x32xf32, #tpu.memory_space<vmem>>, vector<8x32xf32>,
    %c3_i32 = arith.constant 3 : i32
    %41 = arith.cmpi eq, %arg1, %c3_i32 : i32
    %42 = arith.extui %41 : i1 to i32
    %c0_i32_25 = arith.constant 0 : i32
    %43 = arith.cmpi ne, %42, %c0_i32_25 : i32
    scf.if %43 {
      %c0_26 = arith.constant 0 : index
      %c0_27 = arith.constant 0 : index
      %c0_28 = arith.constant 0 : index
      %44 = vector.load %arg2[%c0_26, %c0_27, %c0_28] : memref<1x8x32xf32, #tpu.memory_space<vmem>>, vector<1x8x32xf32>
      %45 = vector.shape_cast %44 : vector<1x8x32xf32> to vector<8x32xf32>
      %c0_29 = arith.constant 0 : index
      %c0_30 = arith.constant 0 : index
      %46 = vector.load %arg18[%c0_29, %c0_30] : memref<8x32xf32, #tpu.memory_space<vmem>>, vector<8x32xf32>
      %c0_31 = arith.constant 0 : index
      %c0_32 = arith.constant 0 : index
      %47 = vector.load %arg8[%c0_31, %c0_32] : memref<1x32xf32, #tpu.memory_space<vmem>>, vector<1x32xf32>
      %48 = vector.broadcast %47 : vector<1x32xf32> to vector<8x32xf32>
      %49 = arith.addf %46, %48 : vector<8x32xf32>
      %50 = arith.addf %45, %49 : vector<8x32xf32>
      %c0_33 = arith.constant 0 : index
      %c0_34 = arith.constant 0 : index
      %51 = vector.load %arg9[%c0_33, %c0_34] : memref<1x32xf32, #tpu.memory_space<vmem>>, vector<1x32xf32>
      %c0_35 = arith.constant 0 : index
      %c0_36 = arith.constant 0 : index
      %52 = vector.load %arg10[%c0_35, %c0_36] : memref<1x32xf32, #tpu.memory_space<vmem>>, vector<1x32xf32>
      %cst_37 = arith.constant dense<0.000000e+00> : vector<8xf32>
      %53 = vector.multi_reduction <add>, %50, %cst_37 [1] : vector<8x32xf32> to vector<8xf32>
      %54 = vector.shape_cast %53 : vector<8xf32> to vector<8x1xf32>
      %cst_38 = arith.constant 3.200000e+01 : f32
      %55 = vector.broadcast %cst_38 : f32 to vector<8x1xf32>
      %56 = arith.divf %54, %55 : vector<8x1xf32>
      %57 = vector.broadcast %56 : vector<8x1xf32> to vector<8x32xf32>
      %58 = arith.subf %50, %57 : vector<8x32xf32>
      %59 = arith.mulf %58, %58 : vector<8x32xf32>
      %cst_39 = arith.constant dense<0.000000e+00> : vector<8xf32>
      %60 = vector.multi_reduction <add>, %59, %cst_39 [1] : vector<8x32xf32> to vector<8xf32>
      %61 = vector.shape_cast %60 : vector<8xf32> to vector<8x1xf32>
      %cst_40 = arith.constant 3.200000e+01 : f32
      %62 = vector.broadcast %cst_40 : f32 to vector<8x1xf32>
      %63 = arith.divf %61, %62 : vector<8x1xf32>
      %64 = vector.broadcast %56 : vector<8x1xf32> to vector<8x32xf32>
      %65 = arith.subf %50, %64 : vector<8x32xf32>
      %cst_41 = arith.constant 9.99999974E-6 : f32
      %66 = vector.broadcast %cst_41 : f32 to vector<8x1xf32>
      %67 = arith.addf %63, %66 : vector<8x1xf32>
      %68 = math.rsqrt %67 : vector<8x1xf32>
      %69 = vector.broadcast %68 : vector<8x1xf32> to vector<8x32xf32>
      %70 = arith.mulf %65, %69 : vector<8x32xf32>
      %71 = vector.broadcast %51 : vector<1x32xf32> to vector<8x32xf32>
      %72 = arith.mulf %70, %71 : vector<8x32xf32>
      %73 = vector.broadcast %52 : vector<1x32xf32> to vector<8x32xf32>
      %74 = arith.addf %72, %73 : vector<8x32xf32>
      %c0_42 = arith.constant 0 : index
      %c0_43 = arith.constant 0 : index
      %75 = vector.load %arg11[%c0_42, %c0_43] : memref<32x64xf32, #tpu.memory_space<vmem>>, vector<32x64xf32>
      %cst_44 = arith.constant dense<0.000000e+00> : vector<8x64xf32>
      %76 = tpu.matmul %74, %75, %cst_44 {dimension_numbers = #tpu.dot_dimension_numbers<[1], [0], [0], [1], [0, 0, 1, 1], [], []>} : vector<8x32xf32>, vector<32x64xf32>, vector<8x64xf32> -> vector<8x64xf32>
      %c0_45 = arith.constant 0 : index
      %c0_46 = arith.constant 0 : index
      %77 = vector.load %arg12[%c0_45, %c0_46] : memref<1x64xf32, #tpu.memory_space<vmem>>, vector<1x64xf32>
      %78 = vector.broadcast %77 : vector<1x64xf32> to vector<8x64xf32>
      %79 = arith.addf %76, %78 : vector<8x64xf32>
      %cst_47 = arith.constant 5.000000e-01 : f32
      %80 = vector.broadcast %cst_47 : f32 to vector<8x64xf32>
      %81 = arith.mulf %80, %79 : vector<8x64xf32>
      %cst_48 = arith.constant 0.707106769 : f32
      %82 = vector.broadcast %cst_48 : f32 to vector<8x64xf32>
      %83 = arith.mulf %79, %82 : vector<8x64xf32>
      %84 = math.erf %83 : vector<8x64xf32>
      %cst_49 = arith.constant 1.000000e+00 : f32
      %85 = vector.broadcast %cst_49 : f32 to vector<8x64xf32>
      %86 = arith.addf %85, %84 : vector<8x64xf32>
      %87 = arith.mulf %81, %86 : vector<8x64xf32>
      %c0_50 = arith.constant 0 : index
      %c0_51 = arith.constant 0 : index
      %88 = vector.load %arg13[%c0_50, %c0_51] : memref<64x32xf32, #tpu.memory_space<vmem>>, vector<64x32xf32>
      %cst_52 = arith.constant dense<0.000000e+00> : vector<8x32xf32>
      %89 = tpu.matmul %87, %88, %cst_52 {dimension_numbers = #tpu.dot_dimension_numbers<[1], [0], [0], [1], [0, 0, 1, 1], [], []>} : vector<8x64xf32>, vector<64x32xf32>, vector<8x32xf32> -> vector<8x32xf32>
      %c0_53 = arith.constant 0 : index
      %c0_54 = arith.constant 0 : index
      %90 = vector.load %arg14[%c0_53, %c0_54] : memref<1x32xf32, #tpu.memory_space<vmem>>, vector<1x32xf32>
      %91 = vector.broadcast %90 : vector<1x32xf32> to vector<8x32xf32>
      %92 = arith.addf %89, %91 : vector<8x32xf32>
      %93 = arith.addf %50, %92 : vector<8x32xf32>
      %c0_55 = arith.constant 0 : index
      %c0_56 = arith.constant 0 : index
      %c0_57 = arith.constant 0 : index
      %94 = vector.load %arg15[%c0_55, %c0_56, %c0_57] : memref<1x8x32xf32, #tpu.memory_space<vmem>>, vector<1x8x32xf32>
      %95 = vector.shape_cast %94 : vector<1x8x32xf32> to vector<8x32xf32>
      %96 = vector.shape_cast %93 : vector<8x32xf32> to vector<1x8x32xf32>
      tpu.vector_store %arg15[%c0_55, %c0_56, %c0_57], %96 {strides = array<i32>} : memref<1x8x32xf32, #tpu.memory_space<vmem>>, vector<1x8x32xf32>,
    } else {
    }
    return
  }
  func.func @transform_0(%arg0: i32, %arg1: i32) -> (i32, i32, i32) {
    %c0_i32 = arith.constant 0 : i32
    %c0_i32_0 = arith.constant 0 : i32
    %c0_i32_1 = arith.constant 0 : i32
    return %arg0, %c0_i32, %c0_i32_0 : i32, i32, i32
  }
  func.func @transform_1(%arg0: i32, %arg1: i32) -> (i32, i32) {
    %c0_i32 = arith.constant 0 : i32
    %c0_i32_0 = arith.constant 0 : i32
    %c0_i32_1 = arith.constant 0 : i32
    return %c0_i32, %c0_i32_0 : i32, i32
  }
  func.func @transform_2(%arg0: i32, %arg1: i32) -> (i32, i32) {
    %c0_i32 = arith.constant 0 : i32
    %c0_i32_0 = arith.constant 0 : i32
    %c0_i32_1 = arith.constant 0 : i32
    return %c0_i32, %c0_i32_0 : i32, i32
  }
  func.func @transform_3(%arg0: i32, %arg1: i32) -> (i32, i32, i32) {
    %c0_i32 = arith.constant 0 : i32
    %c0_i32_0 = arith.constant 0 : i32
    %c0_i32_1 = arith.constant 0 : i32
    return %arg1, %c0_i32, %c0_i32_0 : i32, i32, i32
  }
  func.func @transform_4(%arg0: i32, %arg1: i32) -> (i32, i32, i32) {
    %c0_i32 = arith.constant 0 : i32
    %c0_i32_0 = arith.constant 0 : i32
    %c0_i32_1 = arith.constant 0 : i32
    return %arg1, %c0_i32, %c0_i32_0 : i32, i32, i32
  }
  func.func @transform_5(%arg0: i32, %arg1: i32) -> (i32, i32) {
    %c0_i32 = arith.constant 0 : i32
    %c0_i32_0 = arith.constant 0 : i32
    return %arg1, %c0_i32 : i32, i32
  }
  func.func @transform_6(%arg0: i32, %arg1: i32) -> (i32, i32) {
    %c0_i32 = arith.constant 0 : i32
    %c0_i32_0 = arith.constant 0 : i32
    %c0_i32_1 = arith.constant 0 : i32
    return %c0_i32, %c0_i32_0 : i32, i32
  }
  func.func @transform_7(%arg0: i32, %arg1: i32) -> (i32, i32) {
    %c0_i32 = arith.constant 0 : i32
    %c0_i32_0 = arith.constant 0 : i32
    %c0_i32_1 = arith.constant 0 : i32
    return %c0_i32, %c0_i32_0 : i32, i32
  }
  func.func @transform_8(%arg0: i32, %arg1: i32) -> (i32, i32) {
    %c0_i32 = arith.constant 0 : i32
    %c0_i32_0 = arith.constant 0 : i32
    %c0_i32_1 = arith.constant 0 : i32
    return %c0_i32, %c0_i32_0 : i32, i32
  }
  func.func @transform_9(%arg0: i32, %arg1: i32) -> (i32, i32) {
    %c0_i32 = arith.constant 0 : i32
    %c0_i32_0 = arith.constant 0 : i32
    %c0_i32_1 = arith.constant 0 : i32
    return %c0_i32, %c0_i32_0 : i32, i32
  }
  func.func @transform_10(%arg0: i32, %arg1: i32) -> (i32, i32) {
    %c0_i32 = arith.constant 0 : i32
    %c0_i32_0 = arith.constant 0 : i32
    %c0_i32_1 = arith.constant 0 : i32
    return %c0_i32, %c0_i32_0 : i32, i32
  }
  func.func @transform_11(%arg0: i32, %arg1: i32) -> (i32, i32) {
    %c0_i32 = arith.constant 0 : i32
    %c0_i32_0 = arith.constant 0 : i32
    %c0_i32_1 = arith.constant 0 : i32
    return %c0_i32, %c0_i32_0 : i32, i32
  }
  func.func @transform_12(%arg0: i32, %arg1: i32) -> (i32, i32) {
    %c0_i32 = arith.constant 0 : i32
    %c0_i32_0 = arith.constant 0 : i32
    %c0_i32_1 = arith.constant 0 : i32
    return %c0_i32, %c0_i32_0 : i32, i32
  }
  func.func @transform_13(%arg0: i32, %arg1: i32) -> (i32, i32, i32) {
    %c0_i32 = arith.constant 0 : i32
    %c0_i32_0 = arith.constant 0 : i32
    %c0_i32_1 = arith.constant 0 : i32
    return %arg0, %c0_i32, %c0_i32_0 : i32, i32, i32
  }
  func.func @transform_14(%arg0: i32, %arg1: i32) -> (i32, i32, i32, i32) {
    %c0_i32 = arith.constant 0 : i32
    %c0_i32_0 = arith.constant 0 : i32
    %c0_i32_1 = arith.constant 0 : i32
    return %arg0, %arg1, %c0_i32, %c0_i32_0 : i32, i32, i32, i32
  }
}

</mosaic_0001>

<llo_original>
// kernel: tpu_custom_call.1
$region0: #{tpu_custom_call.1}
  #allocation0 [shape = 'u32[]', space=smem, size = 0x4, offset = 0x4, fixed_abs, tag = 'smem constant byte address 0x4 - core index']
  #allocation1 [shape = 'u32[72,128]{1,0:T(1,128)}', space=vmem, size = 0x9000, scoped, tag = 'internal scratch']
  #allocation2 [shape = 'f32[8,32]{1,0:T(8,128)}', space=vmem, size = 0x1000, scoped, tag = 'scratch operand']
  #allocation3 [shape = 'f32[8,32]{1,0:T(8,128)}', space=vmem, size = 0x1000, scoped, tag = 'scratch operand']
  %s0 = inlined_call_operand.hbm [shape: f32[2,8,32], index: 0, kind: input, shape index: {}]
  %s1 = inlined_call_operand.hbm [shape: f32[1,32], index: 1, kind: input, shape index: {}]
  %s2 = inlined_call_operand.hbm [shape: f32[1,32], index: 2, kind: input, shape index: {}]
  %s3 = inlined_call_operand.vmem [shape: f32[4,32,48], index: 3, kind: input, shape index: {}]
  %s4 = inlined_call_operand.hbm [shape: f32[4,1,48], index: 4, kind: input, shape index: {}]
  %s5 = inlined_call_operand.vmem [shape: f32[64,32], index: 5, kind: input, shape index: {}]
  %s6 = inlined_call_operand.vmem [shape: f32[1,32], index: 6, kind: input, shape index: {}]
  %s7 = inlined_call_operand.vmem [shape: f32[1,32], index: 7, kind: input, shape index: {}]
  %s8 = inlined_call_operand.vmem [shape: f32[1,32], index: 8, kind: input, shape index: {}]
  %s9 = inlined_call_operand.vmem [shape: f32[32,64], index: 9, kind: input, shape index: {}]
  %s10 = inlined_call_operand.vmem [shape: f32[1,64], index: 10, kind: input, shape index: {}]
  %s11 = inlined_call_operand.vmem [shape: f32[64,32], index: 11, kind: input, shape index: {}]
  %s12 = inlined_call_operand.vmem [shape: f32[1,32], index: 12, kind: input, shape index: {}]
  %s13 = inlined_call_operand.hbm [shape: f32[2,8,32], index: 13, kind: output, shape index: {0}]
  %s14 = inlined_call_operand.hbm [shape: f32[2,4,8,8], index: 14, kind: output, shape index: {1}]
  %15 = xla_tuple %s13, %s14
  %s16 = sld [smem:[#allocation0]]
  $region117: #{tpu_custom_call.1} parent=0
    _
  %s18 = ssub.s32 1, %s16
  %s19 = scalar_select 0, %s18, %s16
  $region1: #{tpu_custom_call.1} parent=0
    #allocation4 [shape = 'u8[8192]{0}', space=vmem, size = 0x2000, scoped, tag = 'input window, operand 0']
    #allocation5 [shape = 's32[2]{0}', space=sflag, size = 0x8, scoped, tag = 'scoped memory for tpu_custom_call.1']
    #allocation6 [shape = 's32[2]{0}', space=sflag, size = 0x8, scoped, tag = 'scoped memory for tpu_custom_call.1']
    #allocation7 [shape = 'u8[512]{0}', space=vmem, size = 0x400, scoped, tag = 'input window, operand 1, single buffered']
    #allocation8 [shape = 's32[1]{0}', space=sflag, size = 0x4, scoped, tag = 'scoped memory for tpu_custom_call.1']
    #allocation9 [shape = 'u8[512]{0}', space=vmem, size = 0x400, scoped, tag = 'input window, operand 2, single buffered']
    #allocation10 [shape = 'u8[1024]{0}', space=vmem, size = 0x400, scoped, tag = 'input window, operand 4']
    #allocation11 [shape = 's32[2]{0}', space=sflag, size = 0x8, scoped, tag = 'scoped memory for tpu_custom_call.1']
    #allocation12 [shape = 'u8[8192]{0}', space=vmem, size = 0x2000, scoped, tag = 'output window, operand 0']
    #allocation13 [shape = 'u8[8192]{0}', space=vmem, size = 0x2000, scoped, tag = 'output window, operand 1']
    #allocation14 [shape = 's32[2]{0}', space=sflag, size = 0x8, scoped, tag = 'scoped memory for tpu_custom_call.1']
    %20 = vsyncpa [#allocation5], 0
    %s21 = scalar_lea.sflag [#allocation5], 1
    %22 = vsyncpa %s21, 0
    %23 = vsyncpa [#allocation8], 0
    %24 = vsyncpa [#allocation11], 0
    %s25 = scalar_lea.sflag [#allocation11], 1
    %26 = vsyncpa %s25, 0
    %27 = vsyncpa [#allocation6], 0
    %s28 = scalar_lea.sflag [#allocation6], 1
    %29 = vsyncpa %s28, 0
    %30 = vsyncpa [#allocation14], 0
    %s31 = scalar_lea.sflag [#allocation14], 1
    %32 = vsyncpa %s31, 0
    loop: start=0, step=1, limit=10
    $region2: #{tpu_custom_call.1} parent=1 // loop_pre_header
      _
    $region3: #{tpu_custom_call.1} parent=1 // loop_header
      %s34 = sphi 0, %s38
      %p35 = scmp.ge.s32.totalorder %s34, 10
      %s41 = sphi 0, %s53
      %s42 = sphi 0, %s49
      %s43 = sphi 0, %s41
      %s44 = sphi 0, %s42
      %s45 = sphi 0, %s43
      %s46 = sphi 0, %s44
      %s56 = sphi 0, %s58
      %s59 = sphi 0, %s56
      %s60 = sphi 0, %s59
      %s76 = sphi 0, %s60
      %s80 = sphi 0, %s80
      %s82 = sphi 0, %s80
      %s83 = sphi 0, %s82
      %s97 = sphi 0, %s83
      %s101 = sphi 0, %s101
      %s103 = sphi 0, %s101
      %s104 = sphi 0, %s103
      %s118 = sphi 0, %s104
      %s124 = sphi 0, %s126
      %s127 = sphi 0, %s124
      %s128 = sphi 0, %s127
      %s144 = sphi 0, %s128
      %s150 = sphi 0, %s152
      %s153 = sphi 0, %s150
      %s154 = sphi 0, %s153
      %s170 = sphi 0, %s154
      %s176 = sphi 0, %s178
      %s179 = sphi 0, %s176
      %s180 = sphi 0, %s179
      %s196 = sphi 0, %s180
      %s200 = sphi 0, %s200
      %s202 = sphi 0, %s200
      %s203 = sphi 0, %s202
      %s217 = sphi 0, %s203
      %s221 = sphi 0, %s221
      %s223 = sphi 0, %s221
      %s224 = sphi 0, %s223
      %s238 = sphi 0, %s224
      %s242 = sphi 0, %s242
      %s244 = sphi 0, %s242
      %s245 = sphi 0, %s244
      %s259 = sphi 0, %s245
      %s263 = sphi 0, %s263
      %s265 = sphi 0, %s263
      %s266 = sphi 0, %s265
      %s280 = sphi 0, %s266
      %s284 = sphi 0, %s284
      %s286 = sphi 0, %s284
      %s287 = sphi 0, %s286
      %s301 = sphi 0, %s287
      %s305 = sphi 0, %s305
      %s307 = sphi 0, %s305
      %s308 = sphi 0, %s307
      %s322 = sphi 0, %s308
      %s326 = sphi 0, %s326
      %s328 = sphi 0, %s326
      %s329 = sphi 0, %s328
      %s343 = sphi 0, %s329
      %s349 = sphi 0, %s351
      %s352 = sphi 0, %s349
      %s353 = sphi 0, %s352
      %s369 = sphi 0, %s353
      %s377 = sphi 0, %s379
      %s380 = sphi 0, %s377
      %s381 = sphi 0, %s380
      %s397 = sphi 0, %s381
    $region4: #{tpu_custom_call.1} parent=1 // loop_header_branch
      %37 = sbr.rel (%p35) target = $region8
    $region5: #{tpu_custom_call.1} parent=1 // loop_body
      %s39 = ssub.s32 %s34, 1
      %s40 = ssub.s32 %s34, 2
      %s47 = sadd.s32 1, %s42
      %p48 = scmp.ge.s32.totalorder %s47, 4
      %s49 = scalar_select %p48, 0, %s47
      %s50 = sadd.s32 1, %s41
      %s51 = scalar_select %p48, %s50, %s41
      %p52 = scmp.ge.s32.totalorder %s51, 2
      %s53 = scalar_select %p52, 0, %s51
      %s54 = ssub.s32 %s41, %s53
      %p55 = scmp.eq.s32.totalorder %s54, 0
      %s57 = sadd.s32 %s56, 1
      %s58 = scalar_select %p55, %s56, %s57
      %p61 = pneg %p55
      %p62 = scmp.eq.s32.totalorder %s34, 7
      %p63 = por %p61, %p62
      %p64 = scmp.ne.s32.totalorder %s56, %s59
      %p65 = scmp.eq.s32.totalorder %s34, 0
      %p66 = por %p64, %p65
      %p67 = scmp.ne.s32.totalorder %s56, %s59
      %p68 = scmp.eq.s32.totalorder %s39, 7
      %p69 = por %p67, %p68
      %p70 = scmp.ne.s32.totalorder %s59, %s60
      %p71 = scmp.eq.s32.totalorder %s39, 0
      %p72 = por %p70, %p71
      %p73 = scmp.ne.s32.totalorder %s59, %s60
      %p74 = scmp.eq.s32.totalorder %s40, 7
      %p75 = por %p73, %p74
      %p77 = scmp.ne.s32.totalorder %s60, %s76
      %p78 = scmp.eq.s32.totalorder %s40, 0
      %p79 = por %p77, %p78
      %s81 = sadd.s32 %s80, 1
      %p84 = scmp.eq.s32.totalorder %s34, 7
      %p85 = scmp.ne.s32.totalorder %s80, %s82
      %p86 = scmp.eq.s32.totalorder %s34, 0
      %p87 = por %p85, %p86
      %p88 = scmp.ne.s32.totalorder %s80, %s82
      %p89 = scmp.eq.s32.totalorder %s39, 7
      %p90 = por %p88, %p89
      %p91 = scmp.ne.s32.totalorder %s82, %s83
      %p92 = scmp.eq.s32.totalorder %s39, 0
      %p93 = por %p91, %p92
      %p94 = scmp.ne.s32.totalorder %s82, %s83
      %p95 = scmp.eq.s32.totalorder %s40, 7
      %p96 = por %p94, %p95
      %p98 = scmp.ne.s32.totalorder %s83, %s97
      %p99 = scmp.eq.s32.totalorder %s40, 0
      %p100 = por %p98, %p99
      %s102 = sadd.s32 %s101, 1
      %p105 = scmp.eq.s32.totalorder %s34, 7
      %p106 = scmp.ne.s32.totalorder %s101, %s103
      %p107 = scmp.eq.s32.totalorder %s34, 0
      %p108 = por %p106, %p107
      %p109 = scmp.ne.s32.totalorder %s101, %s103
      %p110 = scmp.eq.s32.totalorder %s39, 7
      %p111 = por %p109, %p110
      %p112 = scmp.ne.s32.totalorder %s103, %s104
      %p113 = scmp.eq.s32.totalorder %s39, 0
      %p114 = por %p112, %p113
      %p115 = scmp.ne.s32.totalorder %s103, %s104
      %p116 = scmp.eq.s32.totalorder %s40, 7
      %p117 = por %p115, %p116
      %p119 = scmp.ne.s32.totalorder %s104, %s118
      %p120 = scmp.eq.s32.totalorder %s40, 0
      %p121 = por %p119, %p120
      %s122 = ssub.s32 %s42, %s49
      %p123 = scmp.eq.s32.totalorder %s122, 0
      %s125 = sadd.s32 %s124, 1
      %s126 = scalar_select %p123, %s124, %s125
      %p129 = pneg %p123
      %p130 = scmp.eq.s32.totalorder %s34, 7
      %p131 = por %p129, %p130
      %p132 = scmp.ne.s32.totalorder %s124, %s127
      %p133 = scmp.eq.s32.totalorder %s34, 0
      %p134 = por %p132, %p133
      %p135 = scmp.ne.s32.totalorder %s124, %s127
      %p136 = scmp.eq.s32.totalorder %s39, 7
      %p137 = por %p135, %p136
      %p138 = scmp.ne.s32.totalorder %s127, %s128
      %p139 = scmp.eq.s32.totalorder %s39, 0
      %p140 = por %p138, %p139
      %p141 = scmp.ne.s32.totalorder %s127, %s128
      %p142 = scmp.eq.s32.totalorder %s40, 7
      %p143 = por %p141, %p142
      %p145 = scmp.ne.s32.totalorder %s128, %s144
      %p146 = scmp.eq.s32.totalorder %s40, 0
      %p147 = por %p145, %p146
      %s148 = ssub.s32 %s42, %s49
      %p149 = scmp.eq.s32.totalorder %s148, 0
      %s151 = sadd.s32 %s150, 1
      %s152 = scalar_select %p149, %s150, %s151
      %p155 = pneg %p149
      %p156 = scmp.eq.s32.totalorder %s34, 7
      %p157 = por %p155, %p156
      %p158 = scmp.ne.s32.totalorder %s150, %s153
      %p159 = scmp.eq.s32.totalorder %s34, 0
      %p160 = por %p158, %p159
      %p161 = scmp.ne.s32.totalorder %s150, %s153
      %p162 = scmp.eq.s32.totalorder %s39, 7
      %p163 = por %p161, %p162
      %p164 = scmp.ne.s32.totalorder %s153, %s154
      %p165 = scmp.eq.s32.totalorder %s39, 0
      %p166 = por %p164, %p165
      %p167 = scmp.ne.s32.totalorder %s153, %s154
      %p168 = scmp.eq.s32.totalorder %s40, 7
      %p169 = por %p167, %p168
      %p171 = scmp.ne.s32.totalorder %s154, %s170
      %p172 = scmp.eq.s32.totalorder %s40, 0
      %p173 = por %p171, %p172
      %s174 = ssub.s32 %s42, %s49
      %p175 = scmp.eq.s32.totalorder %s174, 0
      %s177 = sadd.s32 %s176, 1
      %s178 = scalar_select %p175, %s176, %s177
      %p181 = pneg %p175
      %p182 = scmp.eq.s32.totalorder %s34, 7
      %p183 = por %p181, %p182
      %p184 = scmp.ne.s32.totalorder %s176, %s179
      %p185 = scmp.eq.s32.totalorder %s34, 0
      %p186 = por %p184, %p185
      %p187 = scmp.ne.s32.totalorder %s176, %s179
      %p188 = scmp.eq.s32.totalorder %s39, 7
      %p189 = por %p187, %p188
      %p190 = scmp.ne.s32.totalorder %s179, %s180
      %p191 = scmp.eq.s32.totalorder %s39, 0
      %p192 = por %p190, %p191
      %p193 = scmp.ne.s32.totalorder %s179, %s180
      %p194 = scmp.eq.s32.totalorder %s40, 7
      %p195 = por %p193, %p194
      %p197 = scmp.ne.s32.totalorder %s180, %s196
      %p198 = scmp.eq.s32.totalorder %s40, 0
      %p199 = por %p197, %p198
      %s201 = sadd.s32 %s200, 1
      %p204 = scmp.eq.s32.totalorder %s34, 7
      %p205 = scmp.ne.s32.totalorder %s200, %s202
      %p206 = scmp.eq.s32.totalorder %s34, 0
      %p207 = por %p205, %p206
      %p208 = scmp.ne.s32.totalorder %s200, %s202
      %p209 = scmp.eq.s32.totalorder %s39, 7
      %p210 = por %p208, %p209
      %p211 = scmp.ne.s32.totalorder %s202, %s203
      %p212 = scmp.eq.s32.totalorder %s39, 0
      %p213 = por %p211, %p212
      %p214 = scmp.ne.s32.totalorder %s202, %s203
      %p215 = scmp.eq.s32.totalorder %s40, 7
      %p216 = por %p214, %p215
      %p218 = scmp.ne.s32.totalorder %s203, %s217
      %p219 = scmp.eq.s32.totalorder %s40, 0
      %p220 = por %p218, %p219
      %s222 = sadd.s32 %s221, 1
      %p225 = scmp.eq.s32.totalorder %s34, 7
      %p226 = scmp.ne.s32.totalorder %s221, %s223
      %p227 = scmp.eq.s32.totalorder %s34, 0
      %p228 = por %p226, %p227
      %p229 = scmp.ne.s32.totalorder %s221, %s223
      %p230 = scmp.eq.s32.totalorder %s39, 7
      %p231 = por %p229, %p230
      %p232 = scmp.ne.s32.totalorder %s223, %s224
      %p233 = scmp.eq.s32.totalorder %s39, 0
      %p234 = por %p232, %p233
      %p235 = scmp.ne.s32.totalorder %s223, %s224
      %p236 = scmp.eq.s32.totalorder %s40, 7
      %p237 = por %p235, %p236
      %p239 = scmp.ne.s32.totalorder %s224, %s238
      %p240 = scmp.eq.s32.totalorder %s40, 0
      %p241 = por %p239, %p240
      %s243 = sadd.s32 %s242, 1
      %p246 = scmp.eq.s32.totalorder %s34, 7
      %p247 = scmp.ne.s32.totalorder %s242, %s244
      %p248 = scmp.eq.s32.totalorder %s34, 0
      %p249 = por %p247, %p248
      %p250 = scmp.ne.s32.totalorder %s242, %s244
      %p251 = scmp.eq.s32.totalorder %s39, 7
      %p252 = por %p250, %p251
      %p253 = scmp.ne.s32.totalorder %s244, %s245
      %p254 = scmp.eq.s32.totalorder %s39, 0
      %p255 = por %p253, %p254
      %p256 = scmp.ne.s32.totalorder %s244, %s245
      %p257 = scmp.eq.s32.totalorder %s40, 7
      %p258 = por %p256, %p257
      %p260 = scmp.ne.s32.totalorder %s245, %s259
      %p261 = scmp.eq.s32.totalorder %s40, 0
      %p262 = por %p260, %p261
      %s264 = sadd.s32 %s263, 1
      %p267 = scmp.eq.s32.totalorder %s34, 7
      %p268 = scmp.ne.s32.totalorder %s263, %s265
      %p269 = scmp.eq.s32.totalorder %s34, 0
      %p270 = por %p268, %p269
      %p271 = scmp.ne.s32.totalorder %s263, %s265
      %p272 = scmp.eq.s32.totalorder %s39, 7
      %p273 = por %p271, %p272
      %p274 = scmp.ne.s32.totalorder %s265, %s266
      %p275 = scmp.eq.s32.totalorder %s39, 0
      %p276 = por %p274, %p275
      %p277 = scmp.ne.s32.totalorder %s265, %s266
      %p278 = scmp.eq.s32.totalorder %s40, 7
      %p279 = por %p277, %p278
      %p281 = scmp.ne.s32.totalorder %s266, %s280
      %p282 = scmp.eq.s32.totalorder %s40, 0
      %p283 = por %p281, %p282
      %s285 = sadd.s32 %s284, 1
      %p288 = scmp.eq.s32.totalorder %s34, 7
      %p289 = scmp.ne.s32.totalorder %s284, %s286
      %p290 = scmp.eq.s32.totalorder %s34, 0
      %p291 = por %p289, %p290
      %p292 = scmp.ne.s32.totalorder %s284, %s286
      %p293 = scmp.eq.s32.totalorder %s39, 7
      %p294 = por %p292, %p293
      %p295 = scmp.ne.s32.totalorder %s286, %s287
      %p296 = scmp.eq.s32.totalorder %s39, 0
      %p297 = por %p295, %p296
      %p298 = scmp.ne.s32.totalorder %s286, %s287
      %p299 = scmp.eq.s32.totalorder %s40, 7
      %p300 = por %p298, %p299
      %p302 = scmp.ne.s32.totalorder %s287, %s301
      %p303 = scmp.eq.s32.totalorder %s40, 0
      %p304 = por %p302, %p303
      %s306 = sadd.s32 %s305, 1
      %p309 = scmp.eq.s32.totalorder %s34, 7
      %p310 = scmp.ne.s32.totalorder %s305, %s307
      %p311 = scmp.eq.s32.totalorder %s34, 0
      %p312 = por %p310, %p311
      %p313 = scmp.ne.s32.totalorder %s305, %s307
      %p314 = scmp.eq.s32.totalorder %s39, 7
      %p315 = por %p313, %p314
      %p316 = scmp.ne.s32.totalorder %s307, %s308
      %p317 = scmp.eq.s32.totalorder %s39, 0
      %p318 = por %p316, %p317
      %p319 = scmp.ne.s32.totalorder %s307, %s308
      %p320 = scmp.eq.s32.totalorder %s40, 7
      %p321 = por %p319, %p320
      %p323 = scmp.ne.s32.totalorder %s308, %s322
      %p324 = scmp.eq.s32.totalorder %s40, 0
      %p325 = por %p323, %p324
      %s327 = sadd.s32 %s326, 1
      %p330 = scmp.eq.s32.totalorder %s34, 7
      %p331 = scmp.ne.s32.totalorder %s326, %s328
      %p332 = scmp.eq.s32.totalorder %s34, 0
      %p333 = por %p331, %p332
      %p334 = scmp.ne.s32.totalorder %s326, %s328
      %p335 = scmp.eq.s32.totalorder %s39, 7
      %p336 = por %p334, %p335
      %p337 = scmp.ne.s32.totalorder %s328, %s329
      %p338 = scmp.eq.s32.totalorder %s39, 0
      %p339 = por %p337, %p338
      %p340 = scmp.ne.s32.totalorder %s328, %s329
      %p341 = scmp.eq.s32.totalorder %s40, 7
      %p342 = por %p340, %p341
      %p344 = scmp.ne.s32.totalorder %s329, %s343
      %p345 = scmp.eq.s32.totalorder %s40, 0
      %p346 = por %p344, %p345
      %s347 = ssub.s32 %s41, %s53
      %p348 = scmp.eq.s32.totalorder %s347, 0
      %s350 = sadd.s32 %s349, 1
      %s351 = scalar_select %p348, %s349, %s350
      %p354 = pneg %p348
      %p355 = scmp.eq.s32.totalorder %s34, 7
      %p356 = por %p354, %p355
      %p357 = scmp.ne.s32.totalorder %s349, %s352
      %p358 = scmp.eq.s32.totalorder %s34, 0
      %p359 = por %p357, %p358
      %p360 = scmp.ne.s32.totalorder %s349, %s352
      %p361 = scmp.eq.s32.totalorder %s39, 7
      %p362 = por %p360, %p361
      %p363 = scmp.ne.s32.totalorder %s352, %s353
      %p364 = scmp.eq.s32.totalorder %s39, 0
      %p365 = por %p363, %p364
      %p366 = scmp.ne.s32.totalorder %s352, %s353
      %p367 = scmp.eq.s32.totalorder %s40, 7
      %p368 = por %p366, %p367
      %p370 = scmp.ne.s32.totalorder %s353, %s369
      %p371 = scmp.eq.s32.totalorder %s40, 0
      %p372 = por %p370, %p371
      %s373 = ssub.s32 %s41, %s53
      %s374 = ssub.s32 %s42, %s49
      %s375 = sor.u32 %s373, %s374
      %p376 = scmp.eq.s32.totalorder %s375, 0
      %s378 = sadd.s32 %s377, 1
      %s379 = scalar_select %p376, %s377, %s378
      %p382 = pneg %p376
      %p383 = scmp.eq.s32.totalorder %s34, 7
      %p384 = por %p382, %p383
      %p385 = scmp.ne.s32.totalorder %s377, %s380
      %p386 = scmp.eq.s32.totalorder %s34, 0
      %p387 = por %p385, %p386
      %p388 = scmp.ne.s32.totalorder %s377, %s380
      %p389 = scmp.eq.s32.totalorder %s39, 7
      %p390 = por %p388, %p389
      %p391 = scmp.ne.s32.totalorder %s380, %s381
      %p392 = scmp.eq.s32.totalorder %s39, 0
      %p393 = por %p391, %p392
      %p394 = scmp.ne.s32.totalorder %s380, %s381
      %p395 = scmp.eq.s32.totalorder %s40, 7
      %p396 = por %p394, %p395
      %p398 = scmp.ne.s32.totalorder %s381, %s397
      %p399 = scmp.eq.s32.totalorder %s40, 0
      %p400 = por %p398, %p399
      %p401 = scmp.le.s32.totalorder 1, %s34
      %p402 = scmp.lt.s32.totalorder %s34, 9
      %p403 = pnand %p401, %p402
      %p404 = pneg %p403
      // Predicated region
      $region9: #{tpu_custom_call.1} parent=5 // pred_check
        _
      $region10: #{tpu_custom_call.1} parent=5 // pred_check_branch
        %406 = sbr.rel (%p403) target = $region12
      $region11: #{tpu_custom_call.1} parent=5 // pred_region
        %s407 = ssub.s32 %s34, 1
        // Predicated region
        $region13: #{tpu_custom_call.1} parent=11 // pred_check
          %p408 = pneg %p93
        $region14: #{tpu_custom_call.1} parent=11 // pred_check_branch
          %410 = sbr.rel (%p408) target = $region16
        $region15: #{tpu_custom_call.1} parent=11 // pred_region
          %412 = vsyncadd [#allocation8], 0
          %s414 = sshll.u32 %s1, 4
          %s415 = int_to_ptr.hbm [resolvable:$true] %s414
          %s416 = sshll.u32 [#allocation7], 4
          %s417 = int_to_ptr.vmem [resolvable:$true] %s416
          %419 = dma.hbm_to_vmem [thread:$0]  %s415, 16, %s417, [#allocation8]
        $region16: #{tpu_custom_call.1} parent=11 // pred_fallthru
          _
        // Predicated region
        $region17: #{tpu_custom_call.1} parent=11 // pred_check
          %p420 = pneg %p114
        $region18: #{tpu_custom_call.1} parent=11 // pred_check_branch
          %422 = sbr.rel (%p420) target = $region20
        $region19: #{tpu_custom_call.1} parent=11 // pred_region
          %424 = vsyncadd [#allocation8], 0
          %s426 = sshll.u32 %s2, 4
          %s427 = int_to_ptr.hbm [resolvable:$true] %s426
          %s428 = sshll.u32 [#allocation9], 4
          %s429 = int_to_ptr.vmem [resolvable:$true] %s428
          %431 = dma.hbm_to_vmem [thread:$0]  %s427, 16, %s429, [#allocation8]
        $region20: #{tpu_custom_call.1} parent=11 // pred_fallthru
          _
        // Predicated region
        $region21: #{tpu_custom_call.1} parent=11 // pred_check
          %p432 = pneg %p213
        $region22: #{tpu_custom_call.1} parent=11 // pred_check_branch
          %434 = sbr.rel (%p432) target = $region24
        $region23: #{tpu_custom_call.1} parent=11 // pred_region
          _
        $region24: #{tpu_custom_call.1} parent=11 // pred_fallthru
          _
        // Predicated region
        $region25: #{tpu_custom_call.1} parent=11 // pred_check
          %p435 = pneg %p234
        $region26: #{tpu_custom_call.1} parent=11 // pred_check_branch
          %437 = sbr.rel (%p435) target = $region28
        $region27: #{tpu_custom_call.1} parent=11 // pred_region
          _
        $region28: #{tpu_custom_call.1} parent=11 // pred_fallthru
          _
        // Predicated region
        $region29: #{tpu_custom_call.1} parent=11 // pred_check
          %p438 = pneg %p255
        $region30: #{tpu_custom_call.1} parent=11 // pred_check_branch
          %440 = sbr.rel (%p438) target = $region32
        $region31: #{tpu_custom_call.1} parent=11 // pred_region
          _
        $region32: #{tpu_custom_call.1} parent=11 // pred_fallthru
          _
        // Predicated region
        $region33: #{tpu_custom_call.1} parent=11 // pred_check
          %p441 = pneg %p276
        $region34: #{tpu_custom_call.1} parent=11 // pred_check_branch
          %443 = sbr.rel (%p441) target = $region36
        $region35: #{tpu_custom_call.1} parent=11 // pred_region
          _
        $region36: #{tpu_custom_call.1} parent=11 // pred_fallthru
          _
        // Predicated region
        $region37: #{tpu_custom_call.1} parent=11 // pred_check
          %p444 = pneg %p297
        $region38: #{tpu_custom_call.1} parent=11 // pred_check_branch
          %446 = sbr.rel (%p444) target = $region40
        $region39: #{tpu_custom_call.1} parent=11 // pred_region
          _
        $region40: #{tpu_custom_call.1} parent=11 // pred_fallthru
          _
        // Predicated region
        $region41: #{tpu_custom_call.1} parent=11 // pred_check
          %p447 = pneg %p318
        $region42: #{tpu_custom_call.1} parent=11 // pred_check_branch
          %449 = sbr.rel (%p447) target = $region44
        $region43: #{tpu_custom_call.1} parent=11 // pred_region
          _
        $region44: #{tpu_custom_call.1} parent=11 // pred_fallthru
          _
        // Predicated region
        $region45: #{tpu_custom_call.1} parent=11 // pred_check
          %p450 = pneg %p339
        $region46: #{tpu_custom_call.1} parent=11 // pred_check_branch
          %452 = sbr.rel (%p450) target = $region48
        $region47: #{tpu_custom_call.1} parent=11 // pred_region
          _
        $region48: #{tpu_custom_call.1} parent=11 // pred_fallthru
          _
      $region12: #{tpu_custom_call.1} parent=5 // pred_fallthru
        _
      %p453 = scmp.lt.s32.totalorder %s34, 8
      // Predicated region
      $region49: #{tpu_custom_call.1} parent=5 // pred_check
        %p454 = pneg %p453
      $region50: #{tpu_custom_call.1} parent=5 // pred_check_branch
        %456 = sbr.rel (%p454) target = $region52
      $region51: #{tpu_custom_call.1} parent=5 // pred_region
        // Predicated region
        $region53: #{tpu_custom_call.1} parent=51 // pred_check
          %p457 = pneg %p66
        $region54: #{tpu_custom_call.1} parent=51 // pred_check_branch
          %459 = sbr.rel (%p457) target = $region56
        $region55: #{tpu_custom_call.1} parent=51 // pred_region
          %s460 = sand.u32 %s56, 1
          %s461 = scalar_lea.sflag [#allocation5], %s460
          %s462 = sand.u32 %s56, 1
          %s463 = smul.addr %s462, 8
          %s464 = scalar_lea.vmem [#allocation4], %s463
          %466 = vsyncadd %s461, 0
          %s467 = smul.addr %s41, 8
          %s468 = scalar_lea.hbm %s0, %s467
          %s470 = sshll.u32 %s468, 4
          %s471 = int_to_ptr.hbm [resolvable:$true] %s470
          %s472 = sshll.u32 %s464, 4
          %s473 = int_to_ptr.vmem [resolvable:$true] %s472
          %475 = dma.hbm_to_vmem [thread:$0]  %s471, 128, %s473, %s461
        $region56: #{tpu_custom_call.1} parent=51 // pred_fallthru
          _
        // Predicated region
        $region57: #{tpu_custom_call.1} parent=51 // pred_check
          %p476 = pneg %p134
        $region58: #{tpu_custom_call.1} parent=51 // pred_check_branch
          %478 = sbr.rel (%p476) target = $region60
        $region59: #{tpu_custom_call.1} parent=51 // pred_region
          %p479 = scmp.lt.s32.totalorder %s42, 3
          %s480 = scalar_select %p479, %s42, 3
          %s481 = smul.addr %s480, 4
          %s482 = smul.addr %s481, 8
          %s483 = scalar_lea.vmem %s3, %s482
        $region60: #{tpu_custom_call.1} parent=51 // pred_fallthru
          _
        // Predicated region
        $region61: #{tpu_custom_call.1} parent=51 // pred_check
          %p484 = pneg %p160
        $region62: #{tpu_custom_call.1} parent=51 // pred_check_branch
          %486 = sbr.rel (%p484) target = $region64
        $region63: #{tpu_custom_call.1} parent=51 // pred_region
          %s487 = sand.u32 %s150, 1
          %s488 = scalar_lea.sflag [#allocation11], %s487
          %s489 = sand.u32 %s150, 1
          %s490 = scalar_lea.vmem [#allocation10], %s489
          %492 = vsyncadd %s488, 0
          %s493 = scalar_lea.hbm %s4, %s42
          %s495 = sshll.u32 %s493, 4
          %s496 = int_to_ptr.hbm [resolvable:$true] %s495
          %s497 = sshll.u32 %s490, 4
          %s498 = int_to_ptr.vmem [resolvable:$true] %s497
          %500 = dma.hbm_to_vmem [thread:$0]  %s496, 16, %s498, %s488
        $region64: #{tpu_custom_call.1} parent=51 // pred_fallthru
          _
        // Predicated region
        $region65: #{tpu_custom_call.1} parent=51 // pred_check
          %p501 = pneg %p186
        $region66: #{tpu_custom_call.1} parent=51 // pred_check_branch
          %503 = sbr.rel (%p501) target = $region68
        $region67: #{tpu_custom_call.1} parent=51 // pred_region
          %s504 = smul.u32 2, %s42
          %p505 = scmp.lt.s32.totalorder %s504, 7
          %s506 = scalar_select %p505, %s504, 7
          %s507 = smul.addr %s506, 8
          %s508 = scalar_lea.vmem %s5, %s507
          %s509 = smul.u32 2, %s42
        $region68: #{tpu_custom_call.1} parent=51 // pred_fallthru
          _
      $region52: #{tpu_custom_call.1} parent=5 // pred_fallthru
        _
      %p510 = scmp.le.s32.totalorder 1, %s34
      %p511 = scmp.lt.s32.totalorder %s34, 9
      %p512 = pnand %p510, %p511
      %p513 = pneg %p512
      // Predicated region
      $region69: #{tpu_custom_call.1} parent=5 // pred_check
        _
      $region70: #{tpu_custom_call.1} parent=5 // pred_check_branch
        %515 = sbr.rel (%p512) target = $region72
      $region71: #{tpu_custom_call.1} parent=5 // pred_region
        %s516 = ssub.s32 %s34, 1
        %s517 = sand.u32 %s59, 1
        %s518 = scalar_lea.sflag [#allocation5], %s517
        %s519 = sand.u32 %s59, 1
        %s520 = smul.addr %s519, 8
        %s521 = scalar_lea.vmem [#allocation4], %s520
        // Predicated region
        $region73: #{tpu_custom_call.1} parent=71 // pred_check
          %p522 = pneg %p72
        $region74: #{tpu_custom_call.1} parent=71 // pred_check_branch
          %524 = sbr.rel (%p522) target = $region76
        $region75: #{tpu_custom_call.1} parent=71 // pred_region
          %526 = dma.done %s518, 128
        $region76: #{tpu_custom_call.1} parent=71 // pred_fallthru
          _
        // Predicated region
        $region77: #{tpu_custom_call.1} parent=71 // pred_check
          %p527 = pneg %p93
        $region78: #{tpu_custom_call.1} parent=71 // pred_check_branch
          %529 = sbr.rel (%p527) target = $region80
        $region79: #{tpu_custom_call.1} parent=71 // pred_region
          %531 = dma.done [#allocation8], 16
        $region80: #{tpu_custom_call.1} parent=71 // pred_fallthru
          _
        // Predicated region
        $region81: #{tpu_custom_call.1} parent=71 // pred_check
          %p532 = pneg %p114
        $region82: #{tpu_custom_call.1} parent=71 // pred_check_branch
          %534 = sbr.rel (%p532) target = $region84
        $region83: #{tpu_custom_call.1} parent=71 // pred_region
          %536 = dma.done [#allocation8], 16
        $region84: #{tpu_custom_call.1} parent=71 // pred_fallthru
          _
        %s537 = sand.u32 %s153, 1
        %s538 = scalar_lea.sflag [#allocation11], %s537
        %s539 = sand.u32 %s153, 1
        %s540 = scalar_lea.vmem [#allocation10], %s539
        // Predicated region
        $region85: #{tpu_custom_call.1} parent=71 // pred_check
          %p541 = pneg %p166
        $region86: #{tpu_custom_call.1} parent=71 // pred_check_branch
          %543 = sbr.rel (%p541) target = $region88
        $region87: #{tpu_custom_call.1} parent=71 // pred_region
          %545 = dma.done %s538, 16
        $region88: #{tpu_custom_call.1} parent=71 // pred_fallthru
          _
        %s546 = sand.u32 %s59, 1
        %s547 = scalar_lea.sflag [#allocation5], %s546
        %s548 = sand.u32 %s59, 1
        %s549 = smul.addr %s548, 8
        %s550 = scalar_lea.vmem [#allocation4], %s549
        %p551 = pneg %p72
        %p552 = pneg %p69
        %p553 = pneg %p93
        %p554 = pneg %p90
        %p555 = pneg %p114
        %p556 = pneg %p111
        %p557 = scmp.lt.s32.totalorder %s44, 3
        %s558 = scalar_select %p557, %s44, 3
        %s559 = smul.addr %s558, 4
        %s560 = smul.addr %s559, 8
        %s561 = scalar_lea.vmem %s3, %s560
        %p562 = pneg %p140
        %p563 = pneg %p137
        %s564 = sand.u32 %s153, 1
        %s565 = scalar_lea.sflag [#allocation11], %s564
        %s566 = sand.u32 %s153, 1
        %s567 = scalar_lea.vmem [#allocation10], %s566
        %p568 = pneg %p166
        %p569 = pneg %p163
        %s570 = smul.u32 2, %s44
        %p571 = scmp.lt.s32.totalorder %s570, 7
        %s572 = scalar_select %p571, %s570, 7
        %s573 = smul.addr %s572, 8
        %s574 = scalar_lea.vmem %s5, %s573
        %p575 = pneg %p192
        %p576 = pneg %p189
        %p577 = pneg %p213
        %p578 = pneg %p210
        %p579 = pneg %p234
        %p580 = pneg %p231
        %p581 = pneg %p255
        %p582 = pneg %p252
        %p583 = pneg %p276
        %p584 = pneg %p273
        %p585 = pneg %p297
        %p586 = pneg %p294
        %p587 = pneg %p318
        %p588 = pneg %p315
        %p589 = pneg %p339
        %p590 = pneg %p336
        %p591 = pneg %p365
        %p592 = pneg %p362
        %s593 = sand.u32 %s352, 1
        %s594 = scalar_lea.sflag [#allocation6], %s593
        %s595 = sand.u32 %s352, 1
        %s596 = smul.addr %s595, 8
        %s597 = scalar_lea.vmem [#allocation12], %s596
        %p598 = pneg %p393
        %p599 = pneg %p390
        %s600 = sand.u32 %s380, 1
        %s601 = scalar_lea.sflag [#allocation14], %s600
        %s602 = sand.u32 %s380, 1
        %s603 = smul.addr %s602, 8
        %s604 = scalar_lea.vmem [#allocation13], %s603
        %p605 = scmp.lt.s32.totalorder %s44, 3
        %s606 = scalar_select %p605, %s44, 3
        %s607 = smul.addr %s606, 4
        %s608 = smul.addr %s607, 8
        %s609 = scalar_lea.vmem %s3, %s608
        %s610 = smul.u32 2, %s44
        %p611 = scmp.lt.s32.totalorder %s610, 7
        %s612 = scalar_select %p611, %s610, 7
        %s613 = smul.addr %s612, 8
        %s614 = scalar_lea.vmem %s5, %s613
        %s615 = smul.u32 2, %s44
        %p616 = scmp.eq.s32.totalorder %s44, 0
        // Predicated region
        $region89: #{tpu_custom_call.1} parent=71 // pred_check
          %p617 = pneg %p616
        $region90: #{tpu_custom_call.1} parent=71 // pred_check_branch
          %619 = sbr.rel (%p617) target = $region92
        $region91: #{tpu_custom_call.1} parent=71 // pred_region
          %v620 = vld [vmem:[%s521] sm:$0xff]
          %v621 = vld [vmem:[#allocation7] sm:$0x1]
          %v622 = vld [vmem:[#allocation9] sm:$0x1]
          %vm623 = vcmask 261120
          %v624 = vsel %vm623, %v620, 0.0
          %625 = vadd.xlane.f32.xlu0 %v624
          %v626 = vpop.xlane.xlu0 %625
          %v627 = vrcp.pop 32.0
          %v628 = vmul.f32 32.0, %v627
          %v629 = vsub.f32 1.0, %v628
          %v630 = vmul.f32 %v627, %v629
          %v631 = vadd.f32 %v627, %v630
          %vm632 = vweird.f32 %v627
          %v633 = vsel %vm632, %v627, %v631
          %v634 = vmul.f32 %v626, %v633
          %v635 = vsub.f32 %v620, %v634
          %v636 = vmul.f32 %v635, %v635
          %v637 = vsel %vm623, %v636, 0.0
          %638 = vadd.xlane.f32.xlu0 %v637
          %v639 = vpop.xlane.xlu0 %638
          %v640 = vmul.f32 %v639, %v633
          %v641 = vadd.f32 %v640, 1e-05
          %v642 = vrsqrt.pop %v641
          %v643 = vmul.f32 %v642, %v641
          %v644 = vmul.f32 %v643, %v642
          %v645 = vmul.f32 0.5, %v644
          %v646 = vsub.f32 1.5, %v645
          %v647 = vmul.f32 %v642, %v646
          %vm648 = vweird.f32 %v641
          %vm649 = vweird.f32 %v642
          %vm650 = vmor %vm648, %vm649
          %v651 = vsel %vm650, %v642, %v647
          %v652 = vmul.f32 %v635, %v651
          %v654 = vperm.slane %v621, 0
          %v656 = vmul.f32 %v652, %v654
          %v658 = vperm.slane %v622, 0
          %v660 = vadd.f32 %v656, %v658
          %661 = vst.msk [vmem:[#allocation2] sm:$0xff] %vm623, %v660
          %662 = vst.msk [vmem:[#allocation3] sm:$0xff] %vm623, 0.0
        $region92: #{tpu_custom_call.1} parent=71 // pred_fallthru
          _
        %v663 = vld [vmem:[#allocation2] sm:$0xff]
        %v664 = vld [vmem:[%s609] sm:$0xff]
        %v665 = vld [vmem:[%s609 + $0x8] sm:$0xff]
        %v666 = vld [vmem:[%s609 + $0x10] sm:$0xff]
        %v667 = vld [vmem:[%s609 + $0x18] sm:$0xff]
        %v668 = vld [vmem:[%s540] sm:$0x1]
        %v670 = vperm.slane %v668, 0
        %vm672 = vcmask 261120
        %v674 = vsel %vm672, %v663, 0
        %676 = vmatpush.msra.mxu0 0.0
        %677 = vmatpush.msra.mxu0 0.0
        %678 = vmatpush.msra.mxu0 0.0
        %679 = vmatpush.msra.mxu0 0.0
        %680 = vmatpush.msra.mxu0 0.0
        %681 = vmatpush.msra.mxu0 0.0
        %682 = vmatpush.msra.mxu0 0.0
        %683 = vmatpush.msra.mxu0 0.0
        %684 = vmatpush.msra.mxu0 0.0
        %685 = vmatpush.msra.mxu0 0.0
        %686 = vmatpush.msra.mxu0 0.0
        %687 = vmatpush.msra.mxu0 0.0
        %688 = vmatpush.msra.mxu0 %v667
        %689 = vmatpush.msra.mxu0 %v666
        %690 = vmatpush.msra.mxu0 %v665
        %691 = vmatpush.msra.mxu0 %v664
        %692 = vmatmul.f32.gmra.mxu0 %v674
        %v693 = vpop.f32.mrf.mxu0
        %v694 = vadd.f32 %v670, %v693
        %695 = vdwg.mxu0
        %v696 = vlaneseq
        %v697 = vshrl.u32 %v696, 7
        %v698 = vlaneseq
        %v699 = vand.u32 %v698, 127
        %701 = vrot.lane.b32.xlu0 %v694, 112
        %v702 = vpop.permute.xlu0 %701
        %vm703 = vcmask 130048
        %v704 = vsel %vm703, %v694, 0
        %v706 = vsel %vm703, %v702, 0
        %708 = vmatpush.xpose.msra.mxu0 0.0
        %709 = vmatpush.xpose.msra.mxu0 0.0
        %710 = vmatpush.xpose.msra.mxu0 0.0
        %711 = vmatpush.xpose.msra.mxu0 0.0
        %712 = vmatpush.xpose.msra.mxu0 0.0
        %713 = vmatpush.xpose.msra.mxu0 0.0
        %714 = vmatpush.xpose.msra.mxu0 0.0
        %715 = vmatpush.xpose.msra.mxu0 0.0
        %716 = vmatpush.xpose.msra.mxu0 0.0
        %717 = vmatpush.xpose.msra.mxu0 0.0
        %718 = vmatpush.xpose.msra.mxu0 0.0
        %719 = vmatpush.xpose.msra.mxu0 0.0
        %720 = vmatpush.xpose.msra.mxu0 0.0
        %721 = vmatpush.xpose.msra.mxu0 0.0
        %722 = vmatpush.xpose.msra.mxu0 0.0
        %723 = vmatpush.xpose.msra.mxu0 %v706
        %724 = vmatmul.f32.gmra.mxu0 %v704
        %v725 = vpop.f32.mrf.mxu0
        %v726 = vadd.f32 0.0, %v725
        %727 = vdwg.mxu0
        %v728 = vmul.f32 %v726, 0.25
        %vm729 = vcmp.le.s32.totalorder %v699, %v697
        %v730 = vsel %vm729, %v728, -1e+30
        %vm731 = vcmask 64512
        %v732 = vsel %vm731, %v730, -inf
        %733 = vmax.xlane.f32.xlu0 %v732
        %v734 = vpop.xlane.xlu0 %733
        %v735 = vsub.f32 %v730, %v734
        %v736 = vmul.f32 %v735, 1.442695
        %v737 = vpow.pop %v736
        %v738 = vsel %vm731, %v737, 0.0
        %739 = vadd.xlane.f32.xlu0 %v738
        %v740 = vpop.xlane.xlu0 %739
        %v741 = vrcp.pop %v740
        %v742 = vmul.f32 %v740, %v741
        %v743 = vsub.f32 1.0, %v742
        %v744 = vmul.f32 %v741, %v743
        %v745 = vadd.f32 %v741, %v744
        %vm746 = vweird.f32 %v740
        %vm747 = vweird.f32 %v741
        %vm748 = vmor %vm746, %vm747
        %v749 = vsel %vm748, %v741, %v745
        %v750 = vand.u32 2147483647, %v740
        %vm751 = vcmp.eq.f32.partialorder %v750, 8.507059e+37
        %v752 = vand.u32 %v740, 2147483648
        %v753 = vor.u32 1.1754944e-38, %v752
        %v754 = vsel %vm751, %v753, %v749
        %v755 = vmul.f32 %v737, %v754
        %756 = vst.msk [vmem:[%s604] sm:$0xff] %vm731, %v755
        %757 = vrot.lane.b32.xlu0 %v694, 96
        %v758 = vpop.permute.xlu0 %757
        %v761 = vsel %vm731, %v755, 0
        %763 = vmatpush.msra.mxu0 0.0
        %764 = vmatpush.msra.mxu0 0.0
        %765 = vmatpush.msra.mxu0 0.0
        %766 = vmatpush.msra.mxu0 0.0
        %767 = vmatpush.msra.mxu0 0.0
        %768 = vmatpush.msra.mxu0 0.0
        %769 = vmatpush.msra.mxu0 0.0
        %770 = vmatpush.msra.mxu0 0.0
        %771 = vmatpush.msra.mxu0 0.0
        %772 = vmatpush.msra.mxu0 0.0
        %773 = vmatpush.msra.mxu0 0.0
        %774 = vmatpush.msra.mxu0 0.0
        %775 = vmatpush.msra.mxu0 0.0
        %776 = vmatpush.msra.mxu0 0.0
        %777 = vmatpush.msra.mxu0 0.0
        %778 = vmatpush.msra.mxu0 %v758
        %779 = vmatmul.f32.gmra.mxu0 %v761
        %v780 = vpop.f32.mrf.mxu0
        %v781 = vadd.f32 0.0, %v780
        %782 = vdwg.mxu0
        %v783 = vld [vmem:[#allocation3] sm:$0xff]
        %v784 = vld [vmem:[%s614] sm:$0xff]
        %v785 = vld [vmem:[%s614 + $0x8] sm:$0xff]
        %v787 = vsel %vm703, %v781, 0
        %789 = vmatpush.msra.mxu0 0.0
        %790 = vmatpush.msra.mxu0 0.0
        %791 = vmatpush.msra.mxu0 0.0
        %792 = vmatpush.msra.mxu0 0.0
        %793 = vmatpush.msra.mxu0 0.0
        %794 = vmatpush.msra.mxu0 0.0
        %795 = vmatpush.msra.mxu0 0.0
        %796 = vmatpush.msra.mxu0 0.0
        %797 = vmatpush.msra.mxu0 0.0
        %798 = vmatpush.msra.mxu0 0.0
        %799 = vmatpush.msra.mxu0 0.0
        %800 = vmatpush.msra.mxu0 0.0
        %801 = vmatpush.msra.mxu0 0.0
        %802 = vmatpush.msra.mxu0 0.0
        %803 = vmatpush.msra.mxu0 %v785
        %804 = vmatpush.msra.mxu0 %v784
        %805 = vmatmul.f32.gmra.mxu0 %v787
        %v806 = vpop.f32.mrf.mxu0
        %v807 = vadd.f32 0.0, %v806
        %808 = vdwg.mxu0
        %v809 = vadd.f32 %v783, %v807
        %810 = vst.msk [vmem:[#allocation3] sm:$0xff] %vm672, %v809
        %p811 = scmp.eq.s32.totalorder %s44, 3
        // Predicated region
        $region93: #{tpu_custom_call.1} parent=71 // pred_check
          %p812 = pneg %p811
        $region94: #{tpu_custom_call.1} parent=71 // pred_check_branch
          %814 = sbr.rel (%p812) target = $region96
        $region95: #{tpu_custom_call.1} parent=71 // pred_region
          %v815 = vld [vmem:[%s521] sm:$0xff]
          %v816 = vld [vmem:[#allocation3] sm:$0xff]
          %v817 = vld [vmem:[%s6] sm:$0x1]
          %v819 = vperm.slane %v817, 0
          %v821 = vadd.f32 %v816, %v819
          %v822 = vadd.f32 %v815, %v821
          %v823 = vld [vmem:[%s7] sm:$0x1]
          %v824 = vld [vmem:[%s8] sm:$0x1]
          %v825 = vsel %vm672, %v822, 0.0
          %826 = vadd.xlane.f32.xlu0 %v825
          %v827 = vpop.xlane.xlu0 %826
          %v828 = vrcp.pop 32.0
          %v829 = vmul.f32 32.0, %v828
          %v830 = vsub.f32 1.0, %v829
          %v831 = vmul.f32 %v828, %v830
          %v832 = vadd.f32 %v828, %v831
          %vm833 = vweird.f32 %v828
          %v834 = vsel %vm833, %v828, %v832
          %v835 = vmul.f32 %v827, %v834
          %v836 = vsub.f32 %v822, %v835
          %v837 = vmul.f32 %v836, %v836
          %v838 = vsel %vm672, %v837, 0.0
          %839 = vadd.xlane.f32.xlu0 %v838
          %v840 = vpop.xlane.xlu0 %839
          %v841 = vmul.f32 %v840, %v834
          %v842 = vadd.f32 %v841, 1e-05
          %v843 = vrsqrt.pop %v842
          %v844 = vmul.f32 %v843, %v842
          %v845 = vmul.f32 %v844, %v843
          %v846 = vmul.f32 0.5, %v845
          %v847 = vsub.f32 1.5, %v846
          %v848 = vmul.f32 %v843, %v847
          %vm849 = vweird.f32 %v842
          %vm850 = vweird.f32 %v843
          %vm851 = vmor %vm849, %vm850
          %v852 = vsel %vm851, %v843, %v848
          %v853 = vmul.f32 %v836, %v852
          %v855 = vperm.slane %v823, 0
          %v857 = vmul.f32 %v853, %v855
          %v859 = vperm.slane %v824, 0
          %v861 = vadd.f32 %v857, %v859
          %v862 = vld [vmem:[%s9] sm:$0xff]
          %v863 = vld [vmem:[%s9 + $0x8] sm:$0xff]
          %v864 = vld [vmem:[%s9 + $0x10] sm:$0xff]
          %v865 = vld [vmem:[%s9 + $0x18] sm:$0xff]
          %v866 = vld [vmem:[%s10] sm:$0x1]
          %v868 = vperm.slane %v866, 0
          %v871 = vsel %vm672, %v861, 0
          %873 = vmatpush.msra.mxu0 0.0
          %874 = vmatpush.msra.mxu0 0.0
          %875 = vmatpush.msra.mxu0 0.0
          %876 = vmatpush.msra.mxu0 0.0
          %877 = vmatpush.msra.mxu0 0.0
          %878 = vmatpush.msra.mxu0 0.0
          %879 = vmatpush.msra.mxu0 0.0
          %880 = vmatpush.msra.mxu0 0.0
          %881 = vmatpush.msra.mxu0 0.0
          %882 = vmatpush.msra.mxu0 0.0
          %883 = vmatpush.msra.mxu0 0.0
          %884 = vmatpush.msra.mxu0 0.0
          %885 = vmatpush.msra.mxu0 %v865
          %886 = vmatpush.msra.mxu0 %v864
          %887 = vmatpush.msra.mxu0 %v863
          %888 = vmatpush.msra.mxu0 %v862
          %889 = vmatmul.f32.gmra.mxu0 %v871
          %v890 = vpop.f32.mrf.mxu0
          %v891 = vadd.f32 %v868, %v890
          %892 = vdwg.mxu0
          %v893 = vmul.f32 %v891, 0.5
          %v894 = vmul.f32 %v891, 0.70710677
          %v895 = vmul.f32 %v894, %v894
          %v896 = vmin.f32 16.0, %v895
          %v897 = vmul.f32 %v896, 2.1237322e-06
          %v898 = vadd.f32 %v897, 0.00028619796
          %v899 = vmul.f32 %v896, %v898
          %v900 = vadd.f32 %v899, 0.0036580483
          %v901 = vmul.f32 %v896, %v900
          %v902 = vadd.f32 %v901, 0.05243302
          %v903 = vmul.f32 %v896, %v902
          %v904 = vadd.f32 %v903, 0.18741608
          %v905 = vmul.f32 %v896, %v904
          %v906 = vadd.f32 %v905, 1.1283791
          %v907 = vmul.f32 %v894, %v906
          %v908 = vmul.f32 %v896, 3.8918573e-05
          %v909 = vadd.f32 %v908, 0.001143296
          %v910 = vmul.f32 %v896, %v909
          %v911 = vadd.f32 %v910, 0.014752088
          %v912 = vmul.f32 %v896, %v911
          %v913 = vadd.f32 %v912, 0.112945676
          %v914 = vmul.f32 %v896, %v913
          %v915 = vadd.f32 %v914, 0.4994258
          %v916 = vmul.f32 %v896, %v915
          %v917 = vadd.f32 %v916, 1.0
          %v918 = vrcp.pop %v917
          %v919 = vmul.f32 %v917, %v918
          %v920 = vsub.f32 1.0, %v919
          %v921 = vmul.f32 %v918, %v920
          %v922 = vadd.f32 %v918, %v921
          %vm923 = vweird.f32 %v917
          %vm924 = vweird.f32 %v918
          %vm925 = vmor %vm923, %vm924
          %v926 = vsel %vm925, %v918, %v922
          %v927 = vand.u32 2147483647, %v917
          %vm928 = vcmp.eq.f32.partialorder %v927, 8.507059e+37
          %v929 = vand.u32 %v917, 2147483648
          %v930 = vor.u32 1.1754944e-38, %v929
          %v931 = vsel %vm928, %v930, %v926
          %v932 = vmul.f32 %v907, %v931
          %v933 = vmin.f32 %v932, 1.0
          %v934 = vmax.f32 %v933, -1.0
          %v935 = vadd.f32 %v934, 1.0
          %v936 = vmul.f32 %v893, %v935
          %v937 = vld [vmem:[%s11] sm:$0xff]
          %v938 = vld [vmem:[%s11 + $0x8] sm:$0xff]
          %v939 = vld [vmem:[%s11 + $0x10] sm:$0xff]
          %v940 = vld [vmem:[%s11 + $0x18] sm:$0xff]
          %v941 = vld [vmem:[%s11 + $0x20] sm:$0xff]
          %v942 = vld [vmem:[%s11 + $0x28] sm:$0xff]
          %v943 = vld [vmem:[%s11 + $0x30] sm:$0xff]
          %v944 = vld [vmem:[%s11 + $0x38] sm:$0xff]
          %v945 = vld [vmem:[%s12] sm:$0x1]
          %v947 = vperm.slane %v945, 0
          %vm949 = vcmask 523264
          %v951 = vsel %vm949, %v936, 0
          %953 = vmatpush.msra.mxu0 0.0
          %954 = vmatpush.msra.mxu0 0.0
          %955 = vmatpush.msra.mxu0 0.0
          %956 = vmatpush.msra.mxu0 0.0
          %957 = vmatpush.msra.mxu0 0.0
          %958 = vmatpush.msra.mxu0 0.0
          %959 = vmatpush.msra.mxu0 0.0
          %960 = vmatpush.msra.mxu0 0.0
          %961 = vmatpush.msra.mxu0 %v944
          %962 = vmatpush.msra.mxu0 %v943
          %963 = vmatpush.msra.mxu0 %v942
          %964 = vmatpush.msra.mxu0 %v941
          %965 = vmatpush.msra.mxu0 %v940
          %966 = vmatpush.msra.mxu0 %v939
          %967 = vmatpush.msra.mxu0 %v938
          %968 = vmatpush.msra.mxu0 %v937
          %969 = vmatmul.f32.gmra.mxu0 %v951
          %v970 = vpop.f32.mrf.mxu0
          %v971 = vadd.f32 %v947, %v970
          %972 = vdwg.mxu0
          %v973 = vadd.f32 %v822, %v971
          %974 = vst.msk [vmem:[%s597] sm:$0xff] %vm672, %v973
        $region96: #{tpu_custom_call.1} parent=71 // pred_fallthru
          _
        %s975 = sand.u32 %s352, 1
        %s976 = scalar_lea.sflag [#allocation6], %s975
        %s977 = sand.u32 %s352, 1
        %s978 = smul.addr %s977, 8
        %s979 = scalar_lea.vmem [#allocation12], %s978
        %s980 = sand.u32 %s380, 1
        %s981 = scalar_lea.sflag [#allocation14], %s980
        %s982 = sand.u32 %s380, 1
        %s983 = smul.addr %s982, 8
        %s984 = scalar_lea.vmem [#allocation13], %s983
        // Predicated region
        $region97: #{tpu_custom_call.1} parent=71 // pred_check
          %p985 = pneg %p362
        $region98: #{tpu_custom_call.1} parent=71 // pred_check_branch
          %987 = sbr.rel (%p985) target = $region100
        $region99: #{tpu_custom_call.1} parent=71 // pred_region
          %989 = vsyncadd %s976, 0
          %s990 = smul.addr %s43, 8
          %s991 = scalar_lea.hbm %s13, %s990
          %s993 = sshll.u32 %s979, 4
          %s994 = int_to_ptr.vmem [resolvable:$true] %s993
          %s995 = sshll.u32 %s991, 4
          %s996 = int_to_ptr.hbm [resolvable:$true] %s995
          %998 = dma.vmem_to_hbm [thread:$0]  %s994, 128, %s996, %s976
        $region100: #{tpu_custom_call.1} parent=71 // pred_fallthru
          _
        // Predicated region
        $region101: #{tpu_custom_call.1} parent=71 // pred_check
          %p999 = pneg %p390
        $region102: #{tpu_custom_call.1} parent=71 // pred_check_branch
          %1001 = sbr.rel (%p999) target = $region104
        $region103: #{tpu_custom_call.1} parent=71 // pred_region
          %1003 = vsyncadd %s981, 0
          %s1004 = smul.addr %s43, 4
          %s1005 = sadd.s32 %s44, %s1004
          %s1006 = smul.addr %s1005, 8
          %s1007 = scalar_lea.hbm %s14, %s1006
          %s1009 = sshll.u32 %s984, 4
          %s1010 = int_to_ptr.vmem [resolvable:$true] %s1009
          %s1011 = sshll.u32 %s1007, 4
          %s1012 = int_to_ptr.hbm [resolvable:$true] %s1011
          %1014 = dma.vmem_to_hbm [thread:$0]  %s1010, 128, %s1012, %s981
        $region104: #{tpu_custom_call.1} parent=71 // pred_fallthru
          _
      $region72: #{tpu_custom_call.1} parent=5 // pred_fallthru
        _
      %p1015 = scmp.le.s32.totalorder 2, %s34
      // Predicated region
      $region105: #{tpu_custom_call.1} parent=5 // pred_check
        %p1016 = pneg %p1015
      $region106: #{tpu_custom_call.1} parent=5 // pred_check_branch
        %1018 = sbr.rel (%p1016) target = $region108
      $region107: #{tpu_custom_call.1} parent=5 // pred_region
        %s1019 = ssub.s32 %s34, 2
        // Predicated region
        $region109: #{tpu_custom_call.1} parent=107 // pred_check
          %p1020 = pneg %p368
        $region110: #{tpu_custom_call.1} parent=107 // pred_check_branch
          %1022 = sbr.rel (%p1020) target = $region112
        $region111: #{tpu_custom_call.1} parent=107 // pred_region
          %s1023 = sand.u32 %s353, 1
          %s1024 = scalar_lea.sflag [#allocation6], %s1023
          %s1025 = sand.u32 %s353, 1
          %s1026 = smul.addr %s1025, 8
          %s1027 = scalar_lea.vmem [#allocation12], %s1026
          %1029 = dma.done %s1024, 128
        $region112: #{tpu_custom_call.1} parent=107 // pred_fallthru
          _
        // Predicated region
        $region113: #{tpu_custom_call.1} parent=107 // pred_check
          %p1030 = pneg %p396
        $region114: #{tpu_custom_call.1} parent=107 // pred_check_branch
          %1032 = sbr.rel (%p1030) target = $region116
        $region115: #{tpu_custom_call.1} parent=107 // pred_region
          %s1033 = sand.u32 %s381, 1
          %s1034 = scalar_lea.sflag [#allocation14], %s1033
          %s1035 = sand.u32 %s381, 1
          %s1036 = smul.addr %s1035, 8
          %s1037 = scalar_lea.vmem [#allocation13], %s1036
          %1039 = dma.done %s1034, 128
        $region116: #{tpu_custom_call.1} parent=107 // pred_fallthru
          _
      $region108: #{tpu_custom_call.1} parent=5 // pred_fallthru
        _
    $region6: #{tpu_custom_call.1} parent=1 // loop_footer
      %s38 = sadd.s32 1, %s34
    $region7: #{tpu_custom_call.1} parent=1 // loop_footer_branch
      %33 = sbr.rel target = $region3
    $region8: #{tpu_custom_call.1} parent=1 // loop_exit
      _
    %1040 = vsyncpa [#allocation5], 1
    %s1041 = scalar_lea.sflag [#allocation5], 1
    %1042 = vsyncpa %s1041, 1
    %1043 = vsyncpa [#allocation8], 1
    %1044 = vsyncpa [#allocation11], 1
    %s1045 = scalar_lea.sflag [#allocation11], 1
    %1046 = vsyncpa %s1045, 1
    %1047 = vsyncpa [#allocation6], 1
    %s1048 = scalar_lea.sflag [#allocation6], 1
    %1049 = vsyncpa %s1048, 1
    %1050 = vsyncpa [#allocation14], 1
    %s1051 = scalar_lea.sflag [#allocation14], 1
    %1052 = vsyncpa %s1051, 1

// kernel: tpu_custom_call.1
$region0: #{tpu_custom_call.1}
  #allocation0 [shape = 'u32[]', space=smem, size = 0x4, offset = 0x4, fixed_abs, tag = 'smem constant byte address 0x4 - core index']
  #allocation1 [shape = 'u32[72,128]{1,0:T(1,128)}', space=vmem, size = 0x9000, scoped, tag = 'internal scratch']
  #allocation2 [shape = 'f32[8,32]{1,0:T(8,128)}', space=vmem, size = 0x1000, scoped, tag = 'scratch operand']
  #allocation3 [shape = 'f32[8,32]{1,0:T(8,128)}', space=vmem, size = 0x1000, scoped, tag = 'scratch operand']
  %s0 = inlined_call_operand.hbm [shape: f32[2,8,32], index: 0, kind: input, shape index: {}]
  %s1 = inlined_call_operand.hbm [shape: f32[1,32], index: 1, kind: input, shape index: {}]
  %s2 = inlined_call_operand.hbm [shape: f32[1,32], index: 2, kind: input, shape index: {}]
  %s3 = inlined_call_operand.vmem [shape: f32[4,32,48], index: 3, kind: input, shape index: {}]
  %s4 = inlined_call_operand.hbm [shape: f32[4,1,48], index: 4, kind: input, shape index: {}]
  %s5 = inlined_call_operand.vmem [shape: f32[64,32], index: 5, kind: input, shape index: {}]
  %s6 = inlined_call_operand.vmem [shape: f32[1,32], index: 6, kind: input, shape index: {}]
  %s7 = inlined_call_operand.vmem [shape: f32[1,32], index: 7, kind: input, shape index: {}]
  %s8 = inlined_call_operand.vmem [shape: f32[1,32], index: 8, kind: input, shape index: {}]
  %s9 = inlined_call_operand.vmem [shape: f32[32,64], index: 9, kind: input, shape index: {}]
  %s10 = inlined_call_operand.vmem [shape: f32[1,64], index: 10, kind: input, shape index: {}]
  %s11 = inlined_call_operand.vmem [shape: f32[64,32], index: 11, kind: input, shape index: {}]
  %s12 = inlined_call_operand.vmem [shape: f32[1,32], index: 12, kind: input, shape index: {}]
  %s13 = inlined_call_operand.hbm [shape: f32[2,8,32], index: 13, kind: output, shape index: {0}]
  %s14 = inlined_call_operand.hbm [shape: f32[2,4,8,8], index: 14, kind: output, shape index: {1}]
  %15 = xla_tuple %s13, %s14
  %s16 = sld [smem:[#allocation0]]
  $region117: #{tpu_custom_call.1} parent=0
    _
  %s18 = ssub.s32 1, %s16
  %s19 = scalar_select 0, %s18, %s16
  $region1: #{tpu_custom_call.1} parent=0
    #allocation4 [shape = 'u8[8192]{0}', space=vmem, size = 0x2000, scoped, tag = 'input window, operand 0']
    #allocation5 [shape = 's32[2]{0}', space=sflag, size = 0x8, scoped, tag = 'scoped memory for tpu_custom_call.1']
    #allocation6 [shape = 's32[2]{0}', space=sflag, size = 0x8, scoped, tag = 'scoped memory for tpu_custom_call.1']
    #allocation7 [shape = 'u8[512]{0}', space=vmem, size = 0x400, scoped, tag = 'input window, operand 1, single buffered']
    #allocation8 [shape = 's32[1]{0}', space=sflag, size = 0x4, scoped, tag = 'scoped memory for tpu_custom_call.1']
    #allocation9 [shape = 'u8[512]{0}', space=vmem, size = 0x400, scoped, tag = 'input window, operand 2, single buffered']
    #allocation10 [shape = 'u8[1024]{0}', space=vmem, size = 0x400, scoped, tag = 'input window, operand 4']
    #allocation11 [shape = 's32[2]{0}', space=sflag, size = 0x8, scoped, tag = 'scoped memory for tpu_custom_call.1']
    #allocation12 [shape = 'u8[8192]{0}', space=vmem, size = 0x2000, scoped, tag = 'output window, operand 0']
    #allocation13 [shape = 'u8[8192]{0}', space=vmem, size = 0x2000, scoped, tag = 'output window, operand 1']
    #allocation14 [shape = 's32[2]{0}', space=sflag, size = 0x8, scoped, tag = 'scoped memory for tpu_custom_call.1']
    %20 = vsyncpa [#allocation5], 0
    %s21 = scalar_lea.sflag [#allocation5], 1
    %22 = vsyncpa %s21, 0
    %23 = vsyncpa [#allocation8], 0
    %24 = vsyncpa [#allocation11], 0
    %s25 = scalar_lea.sflag [#allocation11], 1
    %26 = vsyncpa %s25, 0
    %27 = vsyncpa [#allocation6], 0
    %s28 = scalar_lea.sflag [#allocation6], 1
    %29 = vsyncpa %s28, 0
    %30 = vsyncpa [#allocation14], 0
    %s31 = scalar_lea.sflag [#allocation14], 1
    %32 = vsyncpa %s31, 0
    loop: start=0, step=1, limit=10
    $region2: #{tpu_custom_call.1} parent=1 // loop_pre_header
      _
    $region3: #{tpu_custom_call.1} parent=1 // loop_header
      %s34 = sphi 0, %s38
      %p35 = scmp.ge.s32.totalorder %s34, 10
      %s41 = sphi 0, %s53
      %s42 = sphi 0, %s49
      %s43 = sphi 0, %s41
      %s44 = sphi 0, %s42
      %s45 = sphi 0, %s43
      %s46 = sphi 0, %s44
      %s56 = sphi 0, %s58
      %s59 = sphi 0, %s56
      %s60 = sphi 0, %s59
      %s76 = sphi 0, %s60
      %s80 = sphi 0, %s80
      %s82 = sphi 0, %s80
      %s83 = sphi 0, %s82
      %s97 = sphi 0, %s83
      %s101 = sphi 0, %s101
      %s103 = sphi 0, %s101
      %s104 = sphi 0, %s103
      %s118 = sphi 0, %s104
      %s124 = sphi 0, %s126
      %s127 = sphi 0, %s124
      %s128 = sphi 0, %s127
      %s144 = sphi 0, %s128
      %s150 = sphi 0, %s152
      %s153 = sphi 0, %s150
      %s154 = sphi 0, %s153
      %s170 = sphi 0, %s154
      %s176 = sphi 0, %s178
      %s179 = sphi 0, %s176
      %s180 = sphi 0, %s179
      %s196 = sphi 0, %s180
      %s200 = sphi 0, %s200
      %s202 = sphi 0, %s200
      %s203 = sphi 0, %s202
      %s217 = sphi 0, %s203
      %s221 = sphi 0, %s221
      %s223 = sphi 0, %s221
      %s224 = sphi 0, %s223
      %s238 = sphi 0, %s224
      %s242 = sphi 0, %s242
      %s244 = sphi 0, %s242
      %s245 = sphi 0, %s244
      %s259 = sphi 0, %s245
      %s263 = sphi 0, %s263
      %s265 = sphi 0, %s263
      %s266 = sphi 0, %s265
      %s280 = sphi 0, %s266
      %s284 = sphi 0, %s284
      %s286 = sphi 0, %s284
      %s287 = sphi 0, %s286
      %s301 = sphi 0, %s287
      %s305 = sphi 0, %s305
      %s307 = sphi 0, %s305
      %s308 = sphi 0, %s307
      %s322 = sphi 0, %s308
      %s326 = sphi 0, %s326
      %s328 = sphi 0, %s326
      %s329 = sphi 0, %s328
      %s343 = sphi 0, %s329
      %s349 = sphi 0, %s351
      %s352 = sphi 0, %s349
      %s353 = sphi 0, %s352
      %s369 = sphi 0, %s353
      %s377 = sphi 0, %s379
      %s380 = sphi 0, %s377
      %s381 = sphi 0, %s380
      %s397 = sphi 0, %s381
    $region4: #{tpu_custom_call.1} parent=1 // loop_header_branch
      %37 = sbr.rel (%p35) target = $region8
    $region5: #{tpu_custom_call.1} parent=1 // loop_body
      %s39 = ssub.s32 %s34, 1
      %s40 = ssub.s32 %s34, 2
      %s47 = sadd.s32 1, %s42
      %p48 = scmp.ge.s32.totalorder %s47, 4
      %s49 = scalar_select %p48, 0, %s47
      %s50 = sadd.s32 1, %s41
      %s51 = scalar_select %p48, %s50, %s41
      %p52 = scmp.ge.s32.totalorder %s51, 2
      %s53 = scalar_select %p52, 0, %s51
      %s54 = ssub.s32 %s41, %s53
      %p55 = scmp.eq.s32.totalorder %s54, 0
      %s57 = sadd.s32 %s56, 1
      %s58 = scalar_select %p55, %s56, %s57
      %p61 = pneg %p55
      %p62 = scmp.eq.s32.totalorder %s34, 7
      %p63 = por %p61, %p62
      %p64 = scmp.ne.s32.totalorder %s56, %s59
      %p65 = scmp.eq.s32.totalorder %s34, 0
      %p66 = por %p64, %p65
      %p67 = scmp.ne.s32.totalorder %s56, %s59
      %p68 = scmp.eq.s32.totalorder %s39, 7
      %p69 = por %p67, %p68
      %p70 = scmp.ne.s32.totalorder %s59, %s60
      %p71 = scmp.eq.s32.totalorder %s39, 0
      %p72 = por %p70, %p71
      %p73 = scmp.ne.s32.totalorder %s59, %s60
      %p74 = scmp.eq.s32.totalorder %s40, 7
      %p75 = por %p73, %p74
      %p77 = scmp.ne.s32.totalorder %s60, %s76
      %p78 = scmp.eq.s32.totalorder %s40, 0
      %p79 = por %p77, %p78
      %s81 = sadd.s32 %s80, 1
      %p84 = scmp.eq.s32.totalorder %s34, 7
      %p85 = scmp.ne.s32.totalorder %s80, %s82
      %p86 = scmp.eq.s32.totalorder %s34, 0
      %p87 = por %p85, %p86
      %p88 = scmp.ne.s32.totalorder %s80, %s82
      %p89 = scmp.eq.s32.totalorder %s39, 7
      %p90 = por %p88, %p89
      %p91 = scmp.ne.s32.totalorder %s82, %s83
      %p92 = scmp.eq.s32.totalorder %s39, 0
      %p93 = por %p91, %p92
      %p94 = scmp.ne.s32.totalorder %s82, %s83
      %p95 = scmp.eq.s32.totalorder %s40, 7
      %p96 = por %p94, %p95
      %p98 = scmp.ne.s32.totalorder %s83, %s97
      %p99 = scmp.eq.s32.totalorder %s40, 0
      %p100 = por %p98, %p99
      %s102 = sadd.s32 %s101, 1
      %p105 = scmp.eq.s32.totalorder %s34, 7
      %p106 = scmp.ne.s32.totalorder %s101, %s103
      %p107 = scmp.eq.s32.totalorder %s34, 0
      %p108 = por %p106, %p107
      %p109 = scmp.ne.s32.totalorder %s101, %s103
      %p110 = scmp.eq.s32.totalorder %s39, 7
      %p111 = por %p109, %p110
      %p112 = scmp.ne.s32.totalorder %s103, %s104
      %p113 = scmp.eq.s32.totalorder %s39, 0
      %p114 = por %p112, %p113
      %p115 = scmp.ne.s32.totalorder %s103, %s104
      %p116 = scmp.eq.s32.totalorder %s40, 7
      %p117 = por %p115, %p116
      %p119 = scmp.ne.s32.totalorder %s104, %s118
      %p120 = scmp.eq.s32.totalorder %s40, 0
      %p121 = por %p119, %p120
      %s122 = ssub.s32 %s42, %s49
      %p123 = scmp.eq.s32.totalorder %s122, 0
      %s125 = sadd.s32 %s124, 1
      %s126 = scalar_select %p123, %s124, %s125
      %p129 = pneg %p123
      %p130 = scmp.eq.s32.totalorder %s34, 7
      %p131 = por %p129, %p130
      %p132 = scmp.ne.s32.totalorder %s124, %s127
      %p133 = scmp.eq.s32.totalorder %s34, 0
      %p134 = por %p132, %p133
      %p135 = scmp.ne.s32.totalorder %s124, %s127
      %p136 = scmp.eq.s32.totalorder %s39, 7
      %p137 = por %p135, %p136
      %p138 = scmp.ne.s32.totalorder %s127, %s128
      %p139 = scmp.eq.s32.totalorder %s39, 0
      %p140 = por %p138, %p139
      %p141 = scmp.ne.s32.totalorder %s127, %s128
      %p142 = scmp.eq.s32.totalorder %s40, 7
      %p143 = por %p141, %p142
      %p145 = scmp.ne.s32.totalorder %s128, %s144
      %p146 = scmp.eq.s32.totalorder %s40, 0
      %p147 = por %p145, %p146
      %s148 = ssub.s32 %s42, %s49
      %p149 = scmp.eq.s32.totalorder %s148, 0
      %s151 = sadd.s32 %s150, 1
      %s152 = scalar_select %p149, %s150, %s151
      %p155 = pneg %p149
      %p156 = scmp.eq.s32.totalorder %s34, 7
      %p157 = por %p155, %p156
      %p158 = scmp.ne.s32.totalorder %s150, %s153
      %p159 = scmp.eq.s32.totalorder %s34, 0
      %p160 = por %p158, %p159
      %p161 = scmp.ne.s32.totalorder %s150, %s153
      %p162 = scmp.eq.s32.totalorder %s39, 7
      %p163 = por %p161, %p162
      %p164 = scmp.ne.s32.totalorder %s153, %s154
      %p165 = scmp.eq.s32.totalorder %s39, 0
      %p166 = por %p164, %p165
      %p167 = scmp.ne.s32.totalorder %s153, %s154
      %p168 = scmp.eq.s32.totalorder %s40, 7
      %p169 = por %p167, %p168
      %p171 = scmp.ne.s32.totalorder %s154, %s170
      %p172 = scmp.eq.s32.totalorder %s40, 0
      %p173 = por %p171, %p172
      %s174 = ssub.s32 %s42, %s49
      %p175 = scmp.eq.s32.totalorder %s174, 0
      %s177 = sadd.s32 %s176, 1
      %s178 = scalar_select %p175, %s176, %s177
      %p181 = pneg %p175
      %p182 = scmp.eq.s32.totalorder %s34, 7
      %p183 = por %p181, %p182
      %p184 = scmp.ne.s32.totalorder %s176, %s179
      %p185 = scmp.eq.s32.totalorder %s34, 0
      %p186 = por %p184, %p185
      %p187 = scmp.ne.s32.totalorder %s176, %s179
      %p188 = scmp.eq.s32.totalorder %s39, 7
      %p189 = por %p187, %p188
      %p190 = scmp.ne.s32.totalorder %s179, %s180
      %p191 = scmp.eq.s32.totalorder %s39, 0
      %p192 = por %p190, %p191
      %p193 = scmp.ne.s32.totalorder %s179, %s180
      %p194 = scmp.eq.s32.totalorder %s40, 7
      %p195 = por %p193, %p194
      %p197 = scmp.ne.s32.totalorder %s180, %s196
      %p198 = scmp.eq.s32.totalorder %s40, 0
      %p199 = por %p197, %p198
      %s201 = sadd.s32 %s200, 1
      %p204 = scmp.eq.s32.totalorder %s34, 7
      %p205 = scmp.ne.s32.totalorder %s200, %s202
      %p206 = scmp.eq.s32.totalorder %s34, 0
      %p207 = por %p205, %p206
      %p208 = scmp.ne.s32.totalorder %s200, %s202
      %p209 = scmp.eq.s32.totalorder %s39, 7
      %p210 = por %p208, %p209
      %p211 = scmp.ne.s32.totalorder %s202, %s203
      %p212 = scmp.eq.s32.totalorder %s39, 0
      %p213 = por %p211, %p212
      %p214 = scmp.ne.s32.totalorder %s202, %s203
      %p215 = scmp.eq.s32.totalorder %s40, 7
      %p216 = por %p214, %p215
      %p218 = scmp.ne.s32.totalorder %s203, %s217
      %p219 = scmp.eq.s32.totalorder %s40, 0
      %p220 = por %p218, %p219
      %s222 = sadd.s32 %s221, 1
      %p225 = scmp.eq.s32.totalorder %s34, 7
      %p226 = scmp.ne.s32.totalorder %s221, %s223
      %p227 = scmp.eq.s32.totalorder %s34, 0
      %p228 = por %p226, %p227
      %p229 = scmp.ne.s32.totalorder %s221, %s223
      %p230 = scmp.eq.s32.totalorder %s39, 7
      %p231 = por %p229, %p230
      %p232 = scmp.ne.s32.totalorder %s223, %s224
      %p233 = scmp.eq.s32.totalorder %s39, 0
      %p234 = por %p232, %p233
      %p235 = scmp.ne.s32.totalorder %s223, %s224
      %p236 = scmp.eq.s32.totalorder %s40, 7
      %p237 = por %p235, %p236
      %p239 = scmp.ne.s32.totalorder %s224, %s238
      %p240 = scmp.eq.s32.totalorder %s40, 0
      %p241 = por %p239, %p240
      %s243 = sadd.s32 %s242, 1
      %p246 = scmp.eq.s32.totalorder %s34, 7
      %p247 = scmp.ne.s32.totalorder %s242, %s244
      %p248 = scmp.eq.s32.totalorder %s34, 0
      %p249 = por %p247, %p248
      %p250 = scmp.ne.s32.totalorder %s242, %s244
      %p251 = scmp.eq.s32.totalorder %s39, 7
      %p252 = por %p250, %p251
      %p253 = scmp.ne.s32.totalorder %s244, %s245
      %p254 = scmp.eq.s32.totalorder %s39, 0
      %p255 = por %p253, %p254
      %p256 = scmp.ne.s32.totalorder %s244, %s245
      %p257 = scmp.eq.s32.totalorder %s40, 7
      %p258 = por %p256, %p257
      %p260 = scmp.ne.s32.totalorder %s245, %s259
      %p261 = scmp.eq.s32.totalorder %s40, 0
      %p262 = por %p260, %p261
      %s264 = sadd.s32 %s263, 1
      %p267 = scmp.eq.s32.totalorder %s34, 7
      %p268 = scmp.ne.s32.totalorder %s263, %s265
      %p269 = scmp.eq.s32.totalorder %s34, 0
      %p270 = por %p268, %p269
      %p271 = scmp.ne.s32.totalorder %s263, %s265
      %p272 = scmp.eq.s32.totalorder %s39, 7
      %p273 = por %p271, %p272
      %p274 = scmp.ne.s32.totalorder %s265, %s266
      %p275 = scmp.eq.s32.totalorder %s39, 0
      %p276 = por %p274, %p275
      %p277 = scmp.ne.s32.totalorder %s265, %s266
      %p278 = scmp.eq.s32.totalorder %s40, 7
      %p279 = por %p277, %p278
      %p281 = scmp.ne.s32.totalorder %s266, %s280
      %p282 = scmp.eq.s32.totalorder %s40, 0
      %p283 = por %p281, %p282
      %s285 = sadd.s32 %s284, 1
      %p288 = scmp.eq.s32.totalorder %s34, 7
      %p289 = scmp.ne.s32.totalorder %s284, %s286
      %p290 = scmp.eq.s32.totalorder %s34, 0
      %p291 = por %p289, %p290
      %p292 = scmp.ne.s32.totalorder %s284, %s286
      %p293 = scmp.eq.s32.totalorder %s39, 7
      %p294 = por %p292, %p293
      %p295 = scmp.ne.s32.totalorder %s286, %s287
      %p296 = scmp.eq.s32.totalorder %s39, 0
      %p297 = por %p295, %p296
      %p298 = scmp.ne.s32.totalorder %s286, %s287
      %p299 = scmp.eq.s32.totalorder %s40, 7
      %p300 = por %p298, %p299
      %p302 = scmp.ne.s32.totalorder %s287, %s301
      %p303 = scmp.eq.s32.totalorder %s40, 0
      %p304 = por %p302, %p303
      %s306 = sadd.s32 %s305, 1
      %p309 = scmp.eq.s32.totalorder %s34, 7
      %p310 = scmp.ne.s32.totalorder %s305, %s307
      %p311 = scmp.eq.s32.totalorder %s34, 0
      %p312 = por %p310, %p311
      %p313 = scmp.ne.s32.totalorder %s305, %s307
      %p314 = scmp.eq.s32.totalorder %s39, 7
      %p315 = por %p313, %p314
      %p316 = scmp.ne.s32.totalorder %s307, %s308
      %p317 = scmp.eq.s32.totalorder %s39, 0
      %p318 = por %p316, %p317
      %p319 = scmp.ne.s32.totalorder %s307, %s308
      %p320 = scmp.eq.s32.totalorder %s40, 7
      %p321 = por %p319, %p320
      %p323 = scmp.ne.s32.totalorder %s308, %s322
      %p324 = scmp.eq.s32.totalorder %s40, 0
      %p325 = por %p323, %p324
      %s327 = sadd.s32 %s326, 1
      %p330 = scmp.eq.s32.totalorder %s34, 7
      %p331 = scmp.ne.s32.totalorder %s326, %s328
      %p332 = scmp.eq.s32.totalorder %s34, 0
      %p333 = por %p331, %p332
      %p334 = scmp.ne.s32.totalorder %s326, %s328
      %p335 = scmp.eq.s32.totalorder %s39, 7
      %p336 = por %p334, %p335
      %p337 = scmp.ne.s32.totalorder %s328, %s329
      %p338 = scmp.eq.s32.totalorder %s39, 0
      %p339 = por %p337, %p338
      %p340 = scmp.ne.s32.totalorder %s328, %s329
      %p341 = scmp.eq.s32.totalorder %s40, 7
      %p342 = por %p340, %p341
      %p344 = scmp.ne.s32.totalorder %s329, %s343
      %p345 = scmp.eq.s32.totalorder %s40, 0
      %p346 = por %p344, %p345
      %s347 = ssub.s32 %s41, %s53
      %p348 = scmp.eq.s32.totalorder %s347, 0
      %s350 = sadd.s32 %s349, 1
      %s351 = scalar_select %p348, %s349, %s350
      %p354 = pneg %p348
      %p355 = scmp.eq.s32.totalorder %s34, 7
      %p356 = por %p354, %p355
      %p357 = scmp.ne.s32.totalorder %s349, %s352
      %p358 = scmp.eq.s32.totalorder %s34, 0
      %p359 = por %p357, %p358
      %p360 = scmp.ne.s32.totalorder %s349, %s352
      %p361 = scmp.eq.s32.totalorder %s39, 7
      %p362 = por %p360, %p361
      %p363 = scmp.ne.s32.totalorder %s352, %s353
      %p364 = scmp.eq.s32.totalorder %s39, 0
      %p365 = por %p363, %p364
      %p366 = scmp.ne.s32.totalorder %s352, %s353
      %p367 = scmp.eq.s32.totalorder %s40, 7
      %p368 = por %p366, %p367
      %p370 = scmp.ne.s32.totalorder %s353, %s369
      %p371 = scmp.eq.s32.totalorder %s40, 0
      %p372 = por %p370, %p371
      %s373 = ssub.s32 %s41, %s53
      %s374 = ssub.s32 %s42, %s49
      %s375 = sor.u32 %s373, %s374
      %p376 = scmp.eq.s32.totalorder %s375, 0
      %s378 = sadd.s32 %s377, 1
      %s379 = scalar_select %p376, %s377, %s378
      %p382 = pneg %p376
      %p383 = scmp.eq.s32.totalorder %s34, 7
      %p384 = por %p382, %p383
      %p385 = scmp.ne.s32.totalorder %s377, %s380
      %p386 = scmp.eq.s32.totalorder %s34, 0
      %p387 = por %p385, %p386
      %p388 = scmp.ne.s32.totalorder %s377, %s380
      %p389 = scmp.eq.s32.totalorder %s39, 7
      %p390 = por %p388, %p389
      %p391 = scmp.ne.s32.totalorder %s380, %s381
      %p392 = scmp.eq.s32.totalorder %s39, 0
      %p393 = por %p391, %p392
      %p394 = scmp.ne.s32.totalorder %s380, %s381
      %p395 = scmp.eq.s32.totalorder %s40, 7
      %p396 = por %p394, %p395
      %p398 = scmp.ne.s32.totalorder %s381, %s397
      %p399 = scmp.eq.s32.totalorder %s40, 0
      %p400 = por %p398, %p399
      %p401 = scmp.le.s32.totalorder 1, %s34
      %p402 = scmp.lt.s32.totalorder %s34, 9
      %p403 = pnand %p401, %p402
      %p404 = pneg %p403
      // Predicated region
      $region9: #{tpu_custom_call.1} parent=5 // pred_check
        _
      $region10: #{tpu_custom_call.1} parent=5 // pred_check_branch
        %406 = sbr.rel (%p403) target = $region12
      $region11: #{tpu_custom_call.1} parent=5 // pred_region
        %s407 = ssub.s32 %s34, 1
        // Predicated region
        $region13: #{tpu_custom_call.1} parent=11 // pred_check
          %p408 = pneg %p93
        $region14: #{tpu_custom_call.1} parent=11 // pred_check_branch
          %410 = sbr.rel (%p408) target = $region16
        $region15: #{tpu_custom_call.1} parent=11 // pred_region
          %412 = vsyncadd [#allocation8], 0
          %s414 = sshll.u32 %s1, 4
          %s415 = int_to_ptr.hbm [resolvable:$true] %s414
          %s416 = sshll.u32 [#allocation7], 4
          %s417 = int_to_ptr.vmem [resolvable:$true] %s416
          %419 = dma.hbm_to_vmem [thread:$0]  %s415, 16, %s417, [#allocation8]
        $region16: #{tpu_custom_call.1} parent=11 // pred_fallthru
          _
        // Predicated region
        $region17: #{tpu_custom_call.1} parent=11 // pred_check
          %p420 = pneg %p114
        $region18: #{tpu_custom_call.1} parent=11 // pred_check_branch
          %422 = sbr.rel (%p420) target = $region20
        $region19: #{tpu_custom_call.1} parent=11 // pred_region
          %424 = vsyncadd [#allocation8], 0
          %s426 = sshll.u32 %s2, 4
          %s427 = int_to_ptr.hbm [resolvable:$true] %s426
          %s428 = sshll.u32 [#allocation9], 4
          %s429 = int_to_ptr.vmem [resolvable:$true] %s428
          %431 = dma.hbm_to_vmem [thread:$0]  %s427, 16, %s429, [#allocation8]
        $region20: #{tpu_custom_call.1} parent=11 // pred_fallthru
          _
        // Predicated region
        $region21: #{tpu_custom_call.1} parent=11 // pred_check
          %p432 = pneg %p213
        $region22: #{tpu_custom_call.1} parent=11 // pred_check_branch
          %434 = sbr.rel (%p432) target = $region24
        $region23: #{tpu_custom_call.1} parent=11 // pred_region
          _
        $region24: #{tpu_custom_call.1} parent=11 // pred_fallthru
          _
        // Predicated region
        $region25: #{tpu_custom_call.1} parent=11 // pred_check
          %p435 = pneg %p234
        $region26: #{tpu_custom_call.1} parent=11 // pred_check_branch
          %437 = sbr.rel (%p435) target = $region28
        $region27: #{tpu_custom_call.1} parent=11 // pred_region
          _
        $region28: #{tpu_custom_call.1} parent=11 // pred_fallthru
          _
        // Predicated region
        $region29: #{tpu_custom_call.1} parent=11 // pred_check
          %p438 = pneg %p255
        $region30: #{tpu_custom_call.1} parent=11 // pred_check_branch
          %440 = sbr.rel (%p438) target = $region32
        $region31: #{tpu_custom_call.1} parent=11 // pred_region
          _
        $region32: #{tpu_custom_call.1} parent=11 // pred_fallthru
          _
        // Predicated region
        $region33: #{tpu_custom_call.1} parent=11 // pred_check
          %p441 = pneg %p276
        $region34: #{tpu_custom_call.1} parent=11 // pred_check_branch
          %443 = sbr.rel (%p441) target = $region36
        $region35: #{tpu_custom_call.1} parent=11 // pred_region
          _
        $region36: #{tpu_custom_call.1} parent=11 // pred_fallthru
          _
        // Predicated region
        $region37: #{tpu_custom_call.1} parent=11 // pred_check
          %p444 = pneg %p297
        $region38: #{tpu_custom_call.1} parent=11 // pred_check_branch
          %446 = sbr.rel (%p444) target = $region40
        $region39: #{tpu_custom_call.1} parent=11 // pred_region
          _
        $region40: #{tpu_custom_call.1} parent=11 // pred_fallthru
          _
        // Predicated region
        $region41: #{tpu_custom_call.1} parent=11 // pred_check
          %p447 = pneg %p318
        $region42: #{tpu_custom_call.1} parent=11 // pred_check_branch
          %449 = sbr.rel (%p447) target = $region44
        $region43: #{tpu_custom_call.1} parent=11 // pred_region
          _
        $region44: #{tpu_custom_call.1} parent=11 // pred_fallthru
          _
        // Predicated region
        $region45: #{tpu_custom_call.1} parent=11 // pred_check
          %p450 = pneg %p339
        $region46: #{tpu_custom_call.1} parent=11 // pred_check_branch
          %452 = sbr.rel (%p450) target = $region48
        $region47: #{tpu_custom_call.1} parent=11 // pred_region
          _
        $region48: #{tpu_custom_call.1} parent=11 // pred_fallthru
          _
      $region12: #{tpu_custom_call.1} parent=5 // pred_fallthru
        _
      %p453 = scmp.lt.s32.totalorder %s34, 8
      // Predicated region
      $region49: #{tpu_custom_call.1} parent=5 // pred_check
        %p454 = pneg %p453
      $region50: #{tpu_custom_call.1} parent=5 // pred_check_branch
        %456 = sbr.rel (%p454) target = $region52
      $region51: #{tpu_custom_call.1} parent=5 // pred_region
        // Predicated region
        $region53: #{tpu_custom_call.1} parent=51 // pred_check
          %p457 = pneg %p66
        $region54: #{tpu_custom_call.1} parent=51 // pred_check_branch
          %459 = sbr.rel (%p457) target = $region56
        $region55: #{tpu_custom_call.1} parent=51 // pred_region
          %s460 = sand.u32 %s56, 1
          %s461 = scalar_lea.sflag [#allocation5], %s460
          %s462 = sand.u32 %s56, 1
          %s463 = smul.addr %s462, 8
          %s464 = scalar_lea.vmem [#allocation4], %s463
          %466 = vsyncadd %s461, 0
          %s467 = smul.addr %s41, 8
          %s468 = scalar_lea.hbm %s0, %s467
          %s470 = sshll.u32 %s468, 4
          %s471 = int_to_ptr.hbm [resolvable:$true] %s470
          %s472 = sshll.u32 %s464, 4
          %s473 = int_to_ptr.vmem [resolvable:$true] %s472
          %475 = dma.hbm_to_vmem [thread:$0]  %s471, 128, %s473, %s461
        $region56: #{tpu_custom_call.1} parent=51 // pred_fallthru
          _
        // Predicated region
        $region57: #{tpu_custom_call.1} parent=51 // pred_check
          %p476 = pneg %p134
        $region58: #{tpu_custom_call.1} parent=51 // pred_check_branch
          %478 = sbr.rel (%p476) target = $region60
        $region59: #{tpu_custom_call.1} parent=51 // pred_region
          %p479 = scmp.lt.s32.totalorder %s42, 3
          %s480 = scalar_select %p479, %s42, 3
          %s481 = smul.addr %s480, 4
          %s482 = smul.addr %s481, 8
          %s483 = scalar_lea.vmem %s3, %s482
        $region60: #{tpu_custom_call.1} parent=51 // pred_fallthru
          _
        // Predicated region
        $region61: #{tpu_custom_call.1} parent=51 // pred_check
          %p484 = pneg %p160
        $region62: #{tpu_custom_call.1} parent=51 // pred_check_branch
          %486 = sbr.rel (%p484) target = $region64
        $region63: #{tpu_custom_call.1} parent=51 // pred_region
          %s487 = sand.u32 %s150, 1
          %s488 = scalar_lea.sflag [#allocation11], %s487
          %s489 = sand.u32 %s150, 1
          %s490 = scalar_lea.vmem [#allocation10], %s489
          %492 = vsyncadd %s488, 0
          %s493 = scalar_lea.hbm %s4, %s42
          %s495 = sshll.u32 %s493, 4
          %s496 = int_to_ptr.hbm [resolvable:$true] %s495
          %s497 = sshll.u32 %s490, 4
          %s498 = int_to_ptr.vmem [resolvable:$true] %s497
          %500 = dma.hbm_to_vmem [thread:$0]  %s496, 16, %s498, %s488
        $region64: #{tpu_custom_call.1} parent=51 // pred_fallthru
          _
        // Predicated region
        $region65: #{tpu_custom_call.1} parent=51 // pred_check
          %p501 = pneg %p186
        $region66: #{tpu_custom_call.1} parent=51 // pred_check_branch
          %503 = sbr.rel (%p501) target = $region68
        $region67: #{tpu_custom_call.1} parent=51 // pred_region
          %s504 = smul.u32 2, %s42
          %p505 = scmp.lt.s32.totalorder %s504, 7
          %s506 = scalar_select %p505, %s504, 7
          %s507 = smul.addr %s506, 8
          %s508 = scalar_lea.vmem %s5, %s507
          %s509 = smul.u32 2, %s42
        $region68: #{tpu_custom_call.1} parent=51 // pred_fallthru
          _
      $region52: #{tpu_custom_call.1} parent=5 // pred_fallthru
        _
      %p510 = scmp.le.s32.totalorder 1, %s34
      %p511 = scmp.lt.s32.totalorder %s34, 9
      %p512 = pnand %p510, %p511
      %p513 = pneg %p512
      // Predicated region
      $region69: #{tpu_custom_call.1} parent=5 // pred_check
        _
      $region70: #{tpu_custom_call.1} parent=5 // pred_check_branch
        %515 = sbr.rel (%p512) target = $region72
      $region71: #{tpu_custom_call.1} parent=5 // pred_region
        %s516 = ssub.s32 %s34, 1
        %s517 = sand.u32 %s59, 1
        %s518 = scalar_lea.sflag [#allocation5], %s517
        %s519 = sand.u32 %s59, 1
        %s520 = smul.addr %s519, 8
        %s521 = scalar_lea.vmem [#allocation4], %s520
        // Predicated region
        $region73: #{tpu_custom_call.1} parent=71 // pred_check
          %p522 = pneg %p72
        $region74: #{tpu_custom_call.1} parent=71 // pred_check_branch
          %524 = sbr.rel (%p522) target = $region76
        $region75: #{tpu_custom_call.1} parent=71 // pred_region
          %526 = dma.done %s518, 128
        $region76: #{tpu_custom_call.1} parent=71 // pred_fallthru
          _
        // Predicated region
        $region77: #{tpu_custom_call.1} parent=71 // pred_check
          %p527 = pneg %p93
        $region78: #{tpu_custom_call.1} parent=71 // pred_check_branch
          %529 = sbr.rel (%p527) target = $region80
        $region79: #{tpu_custom_call.1} parent=71 // pred_region
          %531 = dma.done [#allocation8], 16
        $region80: #{tpu_custom_call.1} parent=71 // pred_fallthru
          _
        // Predicated region
        $region81: #{tpu_custom_call.1} parent=71 // pred_check
          %p532 = pneg %p114
        $region82: #{tpu_custom_call.1} parent=71 // pred_check_branch
          %534 = sbr.rel (%p532) target = $region84
        $region83: #{tpu_custom_call.1} parent=71 // pred_region
          %536 = dma.done [#allocation8], 16
        $region84: #{tpu_custom_call.1} parent=71 // pred_fallthru
          _
        %s537 = sand.u32 %s153, 1
        %s538 = scalar_lea.sflag [#allocation11], %s537
        %s539 = sand.u32 %s153, 1
        %s540 = scalar_lea.vmem [#allocation10], %s539
        // Predicated region
        $region85: #{tpu_custom_call.1} parent=71 // pred_check
          %p541 = pneg %p166
        $region86: #{tpu_custom_call.1} parent=71 // pred_check_branch
          %543 = sbr.rel (%p541) target = $region88
        $region87: #{tpu_custom_call.1} parent=71 // pred_region
          %545 = dma.done %s538, 16
        $region88: #{tpu_custom_call.1} parent=71 // pred_fallthru
          _
        %s546 = sand.u32 %s59, 1
        %s547 = scalar_lea.sflag [#allocation5], %s546
        %s548 = sand.u32 %s59, 1
        %s549 = smul.addr %s548, 8
        %s550 = scalar_lea.vmem [#allocation4], %s549
        %p551 = pneg %p72
        %p552 = pneg %p69
        %p553 = pneg %p93
        %p554 = pneg %p90
        %p555 = pneg %p114
        %p556 = pneg %p111
        %p557 = scmp.lt.s32.totalorder %s44, 3
        %s558 = scalar_select %p557, %s44, 3
        %s559 = smul.addr %s558, 4
        %s560 = smul.addr %s559, 8
        %s561 = scalar_lea.vmem %s3, %s560
        %p562 = pneg %p140
        %p563 = pneg %p137
        %s564 = sand.u32 %s153, 1
        %s565 = scalar_lea.sflag [#allocation11], %s564
        %s566 = sand.u32 %s153, 1
        %s567 = scalar_lea.vmem [#allocation10], %s566
        %p568 = pneg %p166
        %p569 = pneg %p163
        %s570 = smul.u32 2, %s44
        %p571 = scmp.lt.s32.totalorder %s570, 7
        %s572 = scalar_select %p571, %s570, 7
        %s573 = smul.addr %s572, 8
        %s574 = scalar_lea.vmem %s5, %s573
        %p575 = pneg %p192
        %p576 = pneg %p189
        %p577 = pneg %p213
        %p578 = pneg %p210
        %p579 = pneg %p234
        %p580 = pneg %p231
        %p581 = pneg %p255
        %p582 = pneg %p252
        %p583 = pneg %p276
        %p584 = pneg %p273
        %p585 = pneg %p297
        %p586 = pneg %p294
        %p587 = pneg %p318
        %p588 = pneg %p315
        %p589 = pneg %p339
        %p590 = pneg %p336
        %p591 = pneg %p365
        %p592 = pneg %p362
        %s593 = sand.u32 %s352, 1
        %s594 = scalar_lea.sflag [#allocation6], %s593
        %s595 = sand.u32 %s352, 1
        %s596 = smul.addr %s595, 8
        %s597 = scalar_lea.vmem [#allocation12], %s596
        %p598 = pneg %p393
        %p599 = pneg %p390
        %s600 = sand.u32 %s380, 1
        %s601 = scalar_lea.sflag [#allocation14], %s600
        %s602 = sand.u32 %s380, 1
        %s603 = smul.addr %s602, 8
        %s604 = scalar_lea.vmem [#allocation13], %s603
        %p605 = scmp.lt.s32.totalorder %s44, 3
        %s606 = scalar_select %p605, %s44, 3
        %s607 = smul.addr %s606, 4
        %s608 = smul.addr %s607, 8
        %s609 = scalar_lea.vmem %s3, %s608
        %s610 = smul.u32 2, %s44
        %p611 = scmp.lt.s32.totalorder %s610, 7
        %s612 = scalar_select %p611, %s610, 7
        %s613 = smul.addr %s612, 8
        %s614 = scalar_lea.vmem %s5, %s613
        %s615 = smul.u32 2, %s44
        %p616 = scmp.eq.s32.totalorder %s44, 0
        // Predicated region
        $region89: #{tpu_custom_call.1} parent=71 // pred_check
          %p617 = pneg %p616
        $region90: #{tpu_custom_call.1} parent=71 // pred_check_branch
          %619 = sbr.rel (%p617) target = $region92
        $region91: #{tpu_custom_call.1} parent=71 // pred_region
          %v620 = vld [vmem:[%s521] sm:$0xff]
          %v621 = vld [vmem:[#allocation7] sm:$0x1]
          %v622 = vld [vmem:[#allocation9] sm:$0x1]
          %vm623 = vcmask 261120
          %v624 = vsel %vm623, %v620, 0.0
          %625 = vadd.xlane.f32.xlu0 %v624
          %v626 = vpop.xlane.xlu0 %625
          %v627 = vrcp.pop 32.0
          %v628 = vmul.f32 32.0, %v627
          %v629 = vsub.f32 1.0, %v628
          %v630 = vmul.f32 %v627, %v629
          %v631 = vadd.f32 %v627, %v630
          %vm632 = vweird.f32 %v627
          %v633 = vsel %vm632, %v627, %v631
          %v634 = vmul.f32 %v626, %v633
          %v635 = vsub.f32 %v620, %v634
          %v636 = vmul.f32 %v635, %v635
          %v637 = vsel %vm623, %v636, 0.0
          %638 = vadd.xlane.f32.xlu0 %v637
          %v639 = vpop.xlane.xlu0 %638
          %v640 = vmul.f32 %v639, %v633
          %v641 = vadd.f32 %v640, 1e-05
          %v642 = vrsqrt.pop %v641
          %v643 = vmul.f32 %v642, %v641
          %v644 = vmul.f32 %v643, %v642
          %v645 = vmul.f32 0.5, %v644
          %v646 = vsub.f32 1.5, %v645
          %v647 = vmul.f32 %v642, %v646
          %vm648 = vweird.f32 %v641
          %vm649 = vweird.f32 %v642
          %vm650 = vmor %vm648, %vm649
          %v651 = vsel %vm650, %v642, %v647
          %v652 = vmul.f32 %v635, %v651
          %v654 = vperm.slane %v621, 0
          %v656 = vmul.f32 %v652, %v654
          %v658 = vperm.slane %v622, 0
          %v660 = vadd.f32 %v656, %v658
          %661 = vst.msk [vmem:[#allocation2] sm:$0xff] %vm623, %v660
          %662 = vst.msk [vmem:[#allocation3] sm:$0xff] %vm623, 0.0
        $region92: #{tpu_custom_call.1} parent=71 // pred_fallthru
          _
        %v663 = vld [vmem:[#allocation2] sm:$0xff]
        %v664 = vld [vmem:[%s609] sm:$0xff]
        %v665 = vld [vmem:[%s609 + $0x8] sm:$0xff]
        %v666 = vld [vmem:[%s609 + $0x10] sm:$0xff]
        %v667 = vld [vmem:[%s609 + $0x18] sm:$0xff]
        %v668 = vld [vmem:[%s540] sm:$0x1]
        %v670 = vperm.slane %v668, 0
        %vm672 = vcmask 261120
        %v674 = vsel %vm672, %v663, 0
        %676 = vmatpush.msra.mxu0 0.0
        %677 = vmatpush.msra.mxu0 0.0
        %678 = vmatpush.msra.mxu0 0.0
        %679 = vmatpush.msra.mxu0 0.0
        %680 = vmatpush.msra.mxu0 0.0
        %681 = vmatpush.msra.mxu0 0.0
        %682 = vmatpush.msra.mxu0 0.0
        %683 = vmatpush.msra.mxu0 0.0
        %684 = vmatpush.msra.mxu0 0.0
        %685 = vmatpush.msra.mxu0 0.0
        %686 = vmatpush.msra.mxu0 0.0
        %687 = vmatpush.msra.mxu0 0.0
        %688 = vmatpush.msra.mxu0 %v667
        %689 = vmatpush.msra.mxu0 %v666
        %690 = vmatpush.msra.mxu0 %v665
        %691 = vmatpush.msra.mxu0 %v664
        %692 = vmatmul.f32.gmra.mxu0 %v674
        %v693 = vpop.f32.mrf.mxu0
        %v694 = vadd.f32 %v670, %v693
        %695 = vdwg.mxu0
        %v696 = vlaneseq
        %v697 = vshrl.u32 %v696, 7
        %v698 = vlaneseq
        %v699 = vand.u32 %v698, 127
        %701 = vrot.lane.b32.xlu0 %v694, 112
        %v702 = vpop.permute.xlu0 %701
        %vm703 = vcmask 130048
        %v704 = vsel %vm703, %v694, 0
        %v706 = vsel %vm703, %v702, 0
        %708 = vmatpush.xpose.msra.mxu0 0.0
        %709 = vmatpush.xpose.msra.mxu0 0.0
        %710 = vmatpush.xpose.msra.mxu0 0.0
        %711 = vmatpush.xpose.msra.mxu0 0.0
        %712 = vmatpush.xpose.msra.mxu0 0.0
        %713 = vmatpush.xpose.msra.mxu0 0.0
        %714 = vmatpush.xpose.msra.mxu0 0.0
        %715 = vmatpush.xpose.msra.mxu0 0.0
        %716 = vmatpush.xpose.msra.mxu0 0.0
        %717 = vmatpush.xpose.msra.mxu0 0.0
        %718 = vmatpush.xpose.msra.mxu0 0.0
        %719 = vmatpush.xpose.msra.mxu0 0.0
        %720 = vmatpush.xpose.msra.mxu0 0.0
        %721 = vmatpush.xpose.msra.mxu0 0.0
        %722 = vmatpush.xpose.msra.mxu0 0.0
        %723 = vmatpush.xpose.msra.mxu0 %v706
        %724 = vmatmul.f32.gmra.mxu0 %v704
        %v725 = vpop.f32.mrf.mxu0
        %v726 = vadd.f32 0.0, %v725
        %727 = vdwg.mxu0
        %v728 = vmul.f32 %v726, 0.25
        %vm729 = vcmp.le.s32.totalorder %v699, %v697
        %v730 = vsel %vm729, %v728, -1e+30
        %vm731 = vcmask 64512
        %v732 = vsel %vm731, %v730, -inf
        %733 = vmax.xlane.f32.xlu0 %v732
        %v734 = vpop.xlane.xlu0 %733
        %v735 = vsub.f32 %v730, %v734
        %v736 = vmul.f32 %v735, 1.442695
        %v737 = vpow.pop %v736
        %v738 = vsel %vm731, %v737, 0.0
        %739 = vadd.xlane.f32.xlu0 %v738
        %v740 = vpop.xlane.xlu0 %739
        %v741 = vrcp.pop %v740
        %v742 = vmul.f32 %v740, %v741
        %v743 = vsub.f32 1.0, %v742
        %v744 = vmul.f32 %v741, %v743
        %v745 = vadd.f32 %v741, %v744
        %vm746 = vweird.f32 %v740
        %vm747 = vweird.f32 %v741
        %vm748 = vmor %vm746, %vm747
        %v749 = vsel %vm748, %v741, %v745
        %v750 = vand.u32 2147483647, %v740
        %vm751 = vcmp.eq.f32.partialorder %v750, 8.507059e+37
        %v752 = vand.u32 %v740, 2147483648
        %v753 = vor.u32 1.1754944e-38, %v752
        %v754 = vsel %vm751, %v753, %v749
        %v755 = vmul.f32 %v737, %v754
        %756 = vst.msk [vmem:[%s604] sm:$0xff] %vm731, %v755
        %757 = vrot.lane.b32.xlu0 %v694, 96
        %v758 = vpop.permute.xlu0 %757
        %v761 = vsel %vm731, %v755, 0
        %763 = vmatpush.msra.mxu0 0.0
        %764 = vmatpush.msra.mxu0 0.0
        %765 = vmatpush.msra.mxu0 0.0
        %766 = vmatpush.msra.mxu0 0.0
        %767 = vmatpush.msra.mxu0 0.0
        %768 = vmatpush.msra.mxu0 0.0
        %769 = vmatpush.msra.mxu0 0.0
        %770 = vmatpush.msra.mxu0 0.0
        %771 = vmatpush.msra.mxu0 0.0
        %772 = vmatpush.msra.mxu0 0.0
        %773 = vmatpush.msra.mxu0 0.0
        %774 = vmatpush.msra.mxu0 0.0
        %775 = vmatpush.msra.mxu0 0.0
        %776 = vmatpush.msra.mxu0 0.0
        %777 = vmatpush.msra.mxu0 0.0
        %778 = vmatpush.msra.mxu0 %v758
        %779 = vmatmul.f32.gmra.mxu0 %v761
        %v780 = vpop.f32.mrf.mxu0
        %v781 = vadd.f32 0.0, %v780
        %782 = vdwg.mxu0
        %v783 = vld [vmem:[#allocation3] sm:$0xff]
        %v784 = vld [vmem:[%s614] sm:$0xff]
        %v785 = vld [vmem:[%s614 + $0x8] sm:$0xff]
        %v787 = vsel %vm703, %v781, 0
        %789 = vmatpush.msra.mxu0 0.0
        %790 = vmatpush.msra.mxu0 0.0
        %791 = vmatpush.msra.mxu0 0.0
        %792 = vmatpush.msra.mxu0 0.0
        %793 = vmatpush.msra.mxu0 0.0
        %794 = vmatpush.msra.mxu0 0.0
        %795 = vmatpush.msra.mxu0 0.0
        %796 = vmatpush.msra.mxu0 0.0
        %797 = vmatpush.msra.mxu0 0.0
        %798 = vmatpush.msra.mxu0 0.0
        %799 = vmatpush.msra.mxu0 0.0
        %800 = vmatpush.msra.mxu0 0.0
        %801 = vmatpush.msra.mxu0 0.0
        %802 = vmatpush.msra.mxu0 0.0
        %803 = vmatpush.msra.mxu0 %v785
        %804 = vmatpush.msra.mxu0 %v784
        %805 = vmatmul.f32.gmra.mxu0 %v787
        %v806 = vpop.f32.mrf.mxu0
        %v807 = vadd.f32 0.0, %v806
        %808 = vdwg.mxu0
        %v809 = vadd.f32 %v783, %v807
        %810 = vst.msk [vmem:[#allocation3] sm:$0xff] %vm672, %v809
        %p811 = scmp.eq.s32.totalorder %s44, 3
        // Predicated region
        $region93: #{tpu_custom_call.1} parent=71 // pred_check
          %p812 = pneg %p811
        $region94: #{tpu_custom_call.1} parent=71 // pred_check_branch
          %814 = sbr.rel (%p812) target = $region96
        $region95: #{tpu_custom_call.1} parent=71 // pred_region
          %v815 = vld [vmem:[%s521] sm:$0xff]
          %v816 = vld [vmem:[#allocation3] sm:$0xff]
          %v817 = vld [vmem:[%s6] sm:$0x1]
          %v819 = vperm.slane %v817, 0
          %v821 = vadd.f32 %v816, %v819
          %v822 = vadd.f32 %v815, %v821
          %v823 = vld [vmem:[%s7] sm:$0x1]
          %v824 = vld [vmem:[%s8] sm:$0x1]
          %v825 = vsel %vm672, %v822, 0.0
          %826 = vadd.xlane.f32.xlu0 %v825
          %v827 = vpop.xlane.xlu0 %826
          %v828 = vrcp.pop 32.0
          %v829 = vmul.f32 32.0, %v828
          %v830 = vsub.f32 1.0, %v829
          %v831 = vmul.f32 %v828, %v830
          %v832 = vadd.f32 %v828, %v831
          %vm833 = vweird.f32 %v828
          %v834 = vsel %vm833, %v828, %v832
          %v835 = vmul.f32 %v827, %v834
          %v836 = vsub.f32 %v822, %v835
          %v837 = vmul.f32 %v836, %v836
          %v838 = vsel %vm672, %v837, 0.0
          %839 = vadd.xlane.f32.xlu0 %v838
          %v840 = vpop.xlane.xlu0 %839
          %v841 = vmul.f32 %v840, %v834
          %v842 = vadd.f32 %v841, 1e-05
          %v843 = vrsqrt.pop %v842
          %v844 = vmul.f32 %v843, %v842
          %v845 = vmul.f32 %v844, %v843
          %v846 = vmul.f32 0.5, %v845
          %v847 = vsub.f32 1.5, %v846
          %v848 = vmul.f32 %v843, %v847
          %vm849 = vweird.f32 %v842
          %vm850 = vweird.f32 %v843
          %vm851 = vmor %vm849, %vm850
          %v852 = vsel %vm851, %v843, %v848
          %v853 = vmul.f32 %v836, %v852
          %v855 = vperm.slane %v823, 0
          %v857 = vmul.f32 %v853, %v855
          %v859 = vperm.slane %v824, 0
          %v861 = vadd.f32 %v857, %v859
          %v862 = vld [vmem:[%s9] sm:$0xff]
          %v863 = vld [vmem:[%s9 + $0x8] sm:$0xff]
          %v864 = vld [vmem:[%s9 + $0x10] sm:$0xff]
          %v865 = vld [vmem:[%s9 + $0x18] sm:$0xff]
          %v866 = vld [vmem:[%s10] sm:$0x1]
          %v868 = vperm.slane %v866, 0
          %v871 = vsel %vm672, %v861, 0
          %873 = vmatpush.msra.mxu0 0.0
          %874 = vmatpush.msra.mxu0 0.0
          %875 = vmatpush.msra.mxu0 0.0
          %876 = vmatpush.msra.mxu0 0.0
          %877 = vmatpush.msra.mxu0 0.0
          %878 = vmatpush.msra.mxu0 0.0
          %879 = vmatpush.msra.mxu0 0.0
          %880 = vmatpush.msra.mxu0 0.0
          %881 = vmatpush.msra.mxu0 0.0
          %882 = vmatpush.msra.mxu0 0.0
          %883 = vmatpush.msra.mxu0 0.0
          %884 = vmatpush.msra.mxu0 0.0
          %885 = vmatpush.msra.mxu0 %v865
          %886 = vmatpush.msra.mxu0 %v864
          %887 = vmatpush.msra.mxu0 %v863
          %888 = vmatpush.msra.mxu0 %v862
          %889 = vmatmul.f32.gmra.mxu0 %v871
          %v890 = vpop.f32.mrf.mxu0
          %v891 = vadd.f32 %v868, %v890
          %892 = vdwg.mxu0
          %v893 = vmul.f32 %v891, 0.5
          %v894 = vmul.f32 %v891, 0.70710677
          %v895 = vmul.f32 %v894, %v894
          %v896 = vmin.f32 16.0, %v895
          %v897 = vmul.f32 %v896, 2.1237322e-06
          %v898 = vadd.f32 %v897, 0.00028619796
          %v899 = vmul.f32 %v896, %v898
          %v900 = vadd.f32 %v899, 0.0036580483
          %v901 = vmul.f32 %v896, %v900
          %v902 = vadd.f32 %v901, 0.05243302
          %v903 = vmul.f32 %v896, %v902
          %v904 = vadd.f32 %v903, 0.18741608
          %v905 = vmul.f32 %v896, %v904
          %v906 = vadd.f32 %v905, 1.1283791
          %v907 = vmul.f32 %v894, %v906
          %v908 = vmul.f32 %v896, 3.8918573e-05
          %v909 = vadd.f32 %v908, 0.001143296
          %v910 = vmul.f32 %v896, %v909
          %v911 = vadd.f32 %v910, 0.014752088
          %v912 = vmul.f32 %v896, %v911
          %v913 = vadd.f32 %v912, 0.112945676
          %v914 = vmul.f32 %v896, %v913
          %v915 = vadd.f32 %v914, 0.4994258
          %v916 = vmul.f32 %v896, %v915
          %v917 = vadd.f32 %v916, 1.0
          %v918 = vrcp.pop %v917
          %v919 = vmul.f32 %v917, %v918
          %v920 = vsub.f32 1.0, %v919
          %v921 = vmul.f32 %v918, %v920
          %v922 = vadd.f32 %v918, %v921
          %vm923 = vweird.f32 %v917
          %vm924 = vweird.f32 %v918
          %vm925 = vmor %vm923, %vm924
          %v926 = vsel %vm925, %v918, %v922
          %v927 = vand.u32 2147483647, %v917
          %vm928 = vcmp.eq.f32.partialorder %v927, 8.507059e+37
          %v929 = vand.u32 %v917, 2147483648
          %v930 = vor.u32 1.1754944e-38, %v929
          %v931 = vsel %vm928, %v930, %v926
          %v932 = vmul.f32 %v907, %v931
          %v933 = vmin.f32 %v932, 1.0
          %v934 = vmax.f32 %v933, -1.0
          %v935 = vadd.f32 %v934, 1.0
          %v936 = vmul.f32 %v893, %v935
          %v937 = vld [vmem:[%s11] sm:$0xff]
          %v938 = vld [vmem:[%s11 + $0x8] sm:$0xff]
          %v939 = vld [vmem:[%s11 + $0x10] sm:$0xff]
          %v940 = vld [vmem:[%s11 + $0x18] sm:$0xff]
          %v941 = vld [vmem:[%s11 + $0x20] sm:$0xff]
          %v942 = vld [vmem:[%s11 + $0x28] sm:$0xff]
          %v943 = vld [vmem:[%s11 + $0x30] sm:$0xff]
          %v944 = vld [vmem:[%s11 + $0x38] sm:$0xff]
          %v945 = vld [vmem:[%s12] sm:$0x1]
          %v947 = vperm.slane %v945, 0
          %vm949 = vcmask 523264
          %v951 = vsel %vm949, %v936, 0
          %953 = vmatpush.msra.mxu0 0.0
          %954 = vmatpush.msra.mxu0 0.0
          %955 = vmatpush.msra.mxu0 0.0
          %956 = vmatpush.msra.mxu0 0.0
          %957 = vmatpush.msra.mxu0 0.0
          %958 = vmatpush.msra.mxu0 0.0
          %959 = vmatpush.msra.mxu0 0.0
          %960 = vmatpush.msra.mxu0 0.0
          %961 = vmatpush.msra.mxu0 %v944
          %962 = vmatpush.msra.mxu0 %v943
          %963 = vmatpush.msra.mxu0 %v942
          %964 = vmatpush.msra.mxu0 %v941
          %965 = vmatpush.msra.mxu0 %v940
          %966 = vmatpush.msra.mxu0 %v939
          %967 = vmatpush.msra.mxu0 %v938
          %968 = vmatpush.msra.mxu0 %v937
          %969 = vmatmul.f32.gmra.mxu0 %v951
          %v970 = vpop.f32.mrf.mxu0
          %v971 = vadd.f32 %v947, %v970
          %972 = vdwg.mxu0
          %v973 = vadd.f32 %v822, %v971
          %974 = vst.msk [vmem:[%s597] sm:$0xff] %vm672, %v973
        $region96: #{tpu_custom_call.1} parent=71 // pred_fallthru
          _
        %s975 = sand.u32 %s352, 1
        %s976 = scalar_lea.sflag [#allocation6], %s975
        %s977 = sand.u32 %s352, 1
        %s978 = smul.addr %s977, 8
        %s979 = scalar_lea.vmem [#allocation12], %s978
        %s980 = sand.u32 %s380, 1
        %s981 = scalar_lea.sflag [#allocation14], %s980
        %s982 = sand.u32 %s380, 1
        %s983 = smul.addr %s982, 8
        %s984 = scalar_lea.vmem [#allocation13], %s983
        // Predicated region
        $region97: #{tpu_custom_call.1} parent=71 // pred_check
          %p985 = pneg %p362
        $region98: #{tpu_custom_call.1} parent=71 // pred_check_branch
          %987 = sbr.rel (%p985) target = $region100
        $region99: #{tpu_custom_call.1} parent=71 // pred_region
          %989 = vsyncadd %s976, 0
          %s990 = smul.addr %s43, 8
          %s991 = scalar_lea.hbm %s13, %s990
          %s993 = sshll.u32 %s979, 4
          %s994 = int_to_ptr.vmem [resolvable:$true] %s993
          %s995 = sshll.u32 %s991, 4
          %s996 = int_to_ptr.hbm [resolvable:$true] %s995
          %998 = dma.vmem_to_hbm [thread:$0]  %s994, 128, %s996, %s976
        $region100: #{tpu_custom_call.1} parent=71 // pred_fallthru
          _
        // Predicated region
        $region101: #{tpu_custom_call.1} parent=71 // pred_check
          %p999 = pneg %p390
        $region102: #{tpu_custom_call.1} parent=71 // pred_check_branch
          %1001 = sbr.rel (%p999) target = $region104
        $region103: #{tpu_custom_call.1} parent=71 // pred_region
          %1003 = vsyncadd %s981, 0
          %s1004 = smul.addr %s43, 4
          %s1005 = sadd.s32 %s44, %s1004
          %s1006 = smul.addr %s1005, 8
          %s1007 = scalar_lea.hbm %s14, %s1006
          %s1009 = sshll.u32 %s984, 4
          %s1010 = int_to_ptr.vmem [resolvable:$true] %s1009
          %s1011 = sshll.u32 %s1007, 4
          %s1012 = int_to_ptr.hbm [resolvable:$true] %s1011
          %1014 = dma.vmem_to_hbm [thread:$0]  %s1010, 128, %s1012, %s981
        $region104: #{tpu_custom_call.1} parent=71 // pred_fallthru
          _
      $region72: #{tpu_custom_call.1} parent=5 // pred_fallthru
        _
      %p1015 = scmp.le.s32.totalorder 2, %s34
      // Predicated region
      $region105: #{tpu_custom_call.1} parent=5 // pred_check
        %p1016 = pneg %p1015
      $region106: #{tpu_custom_call.1} parent=5 // pred_check_branch
        %1018 = sbr.rel (%p1016) target = $region108
      $region107: #{tpu_custom_call.1} parent=5 // pred_region
        %s1019 = ssub.s32 %s34, 2
        // Predicated region
        $region109: #{tpu_custom_call.1} parent=107 // pred_check
          %p1020 = pneg %p368
        $region110: #{tpu_custom_call.1} parent=107 // pred_check_branch
          %1022 = sbr.rel (%p1020) target = $region112
        $region111: #{tpu_custom_call.1} parent=107 // pred_region
          %s1023 = sand.u32 %s353, 1
          %s1024 = scalar_lea.sflag [#allocation6], %s1023
          %s1025 = sand.u32 %s353, 1
          %s1026 = smul.addr %s1025, 8
          %s1027 = scalar_lea.vmem [#allocation12], %s1026
          %1029 = dma.done %s1024, 128
        $region112: #{tpu_custom_call.1} parent=107 // pred_fallthru
          _
        // Predicated region
        $region113: #{tpu_custom_call.1} parent=107 // pred_check
          %p1030 = pneg %p396
        $region114: #{tpu_custom_call.1} parent=107 // pred_check_branch
          %1032 = sbr.rel (%p1030) target = $region116
        $region115: #{tpu_custom_call.1} parent=107 // pred_region
          %s1033 = sand.u32 %s381, 1
          %s1034 = scalar_lea.sflag [#allocation14], %s1033
          %s1035 = sand.u32 %s381, 1
          %s1036 = smul.addr %s1035, 8
          %s1037 = scalar_lea.vmem [#allocation13], %s1036
          %1039 = dma.done %s1034, 128
        $region116: #{tpu_custom_call.1} parent=107 // pred_fallthru
          _
      $region108: #{tpu_custom_call.1} parent=5 // pred_fallthru
        _
    $region6: #{tpu_custom_call.1} parent=1 // loop_footer
      %s38 = sadd.s32 1, %s34
    $region7: #{tpu_custom_call.1} parent=1 // loop_footer_branch
      %33 = sbr.rel target = $region3
    $region8: #{tpu_custom_call.1} parent=1 // loop_exit
      _
    %1040 = vsyncpa [#allocation5], 1
    %s1041 = scalar_lea.sflag [#allocation5], 1
    %1042 = vsyncpa %s1041, 1
    %1043 = vsyncpa [#allocation8], 1
    %1044 = vsyncpa [#allocation11], 1
    %s1045 = scalar_lea.sflag [#allocation11], 1
    %1046 = vsyncpa %s1045, 1
    %1047 = vsyncpa [#allocation6], 1
    %s1048 = scalar_lea.sflag [#allocation6], 1
    %1049 = vsyncpa %s1048, 1
    %1050 = vsyncpa [#allocation14], 1
    %s1051 = scalar_lea.sflag [#allocation14], 1
    %1052 = vsyncpa %s1051, 1

</llo_original>
